<compile_context>
chip_gen: v7x
topology: tpu7x:2x2x1
jax: 0.10.0
libtpu: 0.0.40
codegen_flags: <defaults>
</compile_context>

<pallas_src>
import functools

import jax
import jax.numpy as jnp
from jax import lax
from jax.experimental import pallas as pl
from jax.experimental.pallas import tpu as pltpu


def _round_up(x, m):
    return (x + m - 1) // m * m


def _bottleneck_kernel(x_top_ref, x_mid_ref, x_bot_ref,
                       w1_ref, w2_ref, w3_ref,
                       b1_ref, b2_ref, b3_ref,
                       o_ref, pad_ref,
                       *, TH, W, C, P):
    """One (batch, H-tile) pair per grid step.  Channel dims are 128-padded.

    x_top_ref: (1, 1,  W, C) f32   row above the tile (clamped at image top)
    x_mid_ref: (1, TH, W, C) f32   the tile itself (also the residual)
    x_bot_ref: (1, 1,  W, C) f32   row below the tile (clamped at image bottom)
    w1_ref   : (C, P)       bf16   conv1 weight, BN1 scale folded
    w2_ref   : (3, 3P, P)   bf16   conv2 weight, kx-major, ky stacked into K
    w3_ref   : (P, C)       bf16   conv3 weight, BN3 scale folded
    b*_ref   : (1, P)/(1,C) f32    BN shifts
    o_ref    : (1, TH, W, C) f32
    pad_ref  : VMEM (TH+2, W, P) bf16 scratch: conv1 output + 1-row H halo.
    """
    f32, bf16 = jnp.float32, jnp.bfloat16
    i = pl.program_id(1)
    n_h = pl.num_programs(1)
    THW = TH * W

    # ---- conv1 (1x1) + bias + ReLU on the tile plus its 1-row H halo -------
    x_all = jnp.concatenate(
        [x_top_ref[0].astype(bf16),
         x_mid_ref[0].astype(bf16),
         x_bot_ref[0].astype(bf16)], axis=0)               # (TH+2, W, C) bf16
    x_all = x_all.reshape((TH + 2) * W, C)
    y1 = jnp.dot(x_all, w1_ref[...], preferred_element_type=f32)
    y1 = jnp.maximum(y1 + b1_ref[...], 0.0)
    # Single aligned store; the scratch is bf16 so the cast happens once here.
    pad_ref[...] = y1.reshape(TH + 2, W, P).astype(bf16)

    # Halo rows at the true image border are zero padding, not neighbor data.
    @pl.when(i == 0)
    def _():
        pad_ref[0] = jnp.zeros((W, P), bf16)

    @pl.when(i == n_h - 1)
    def _():
        pad_ref[TH + 1] = jnp.zeros((W, P), bf16)

    # ---- conv2 (3x3, stride 1, pad 1) + bias + ReLU -------------------------
    # K-stack the three ky taps: LHS (THW, 3P), 3 MXU matmuls with K = 3P.
    lhs = jnp.concatenate([pad_ref[ky:ky + TH] for ky in range(3)], axis=-1)
    lhs = lhs.reshape(THW, 3 * P)                              # bf16
    t0 = jnp.dot(lhs, w2_ref[0], preferred_element_type=f32)   # kx = 0 (w-1)
    t1 = jnp.dot(lhs, w2_ref[1], preferred_element_type=f32)   # kx = 1 (w)
    t2 = jnp.dot(lhs, w2_ref[2], preferred_element_type=f32)   # kx = 2 (w+1)

    # The +/-1 W shift of the kx=0/2 taps is applied to the matmul outputs
    # (sublane roll on the XLU + edge-column mask) so the scratch needs no W
    # halo and every load/store above stays aligned.
    col = lax.broadcasted_iota(jnp.int32, (THW, P), 0) % W
    acc = t1                                                   # first tap: no zeros+add
    acc = acc + jnp.where(col > 0, pltpu.roll(t0, 1, axis=0), 0.0)
    acc = acc + jnp.where(col < W - 1, pltpu.roll(t2, THW - 1, axis=0), 0.0)
    y2 = jnp.maximum(acc + b2_ref[...], 0.0)                   # (THW, P) f32

    # ---- conv3 (1x1) + bias, residual add, ReLU ----------------------------
    y3 = jnp.dot(y2.astype(bf16), w3_ref[...], preferred_element_type=f32)
    y3 = y3 + b3_ref[...]
    res = x_mid_ref[0].reshape(THW, C)        # re-read x; not kept live
    o_ref[0] = jnp.maximum(y3 + res, 0.0).reshape(TH, W, C)


def bottleneck_forward(x_nhwc, params, *, th=8):
    """x_nhwc: (N, H, W, Cin) float32. Cin must equal 4*planes (no downsample)."""
    N, H, W, Cin = x_nhwc.shape
    w1, w2, w3, s1, b1, s2, b2, s3, b3 = params
    P, Cout = w1.shape[1], w3.shape[1]
    assert Cout == Cin, "residual add requires inplanes == planes * 4"
    assert W % 8 == 0, "W must be a multiple of 8 (sublane tiling)"
    TH = th if H % th == 0 else H             # H tile (pick smaller on v7x)
    nH = H // TH

    # Fold the BN scales into the conv weights and quantize weights to bf16
    # (MXU inputs); the BN shifts stay f32 and are added in-kernel.
    w1f = (w1 * s1).astype(jnp.bfloat16)
    w2f = (w2 * s2.reshape(1, 1, 1, P)).astype(jnp.bfloat16)
    w3f = (w3 * s3).astype(jnp.bfloat16)

    # Pad channel dims to multiples of 128 (lane-dense).  With real ResNet
    # channel counts the activation pad / output slice are no-ops.
    Cp, Pp = _round_up(Cin, 128), _round_up(P, 128)

    def padc(a, axes_targets):
        widths = [(0, 0)] * a.ndim
        for ax, tgt in axes_targets:
            widths[ax] = (0, tgt - a.shape[ax])
        return jnp.pad(a, widths) if any(wd != (0, 0) for wd in widths) else a

    xp = padc(x_nhwc, [(3, Cp)])
    w1p = padc(w1f, [(0, Cp), (1, Pp)])
    w2p = padc(w2f, [(2, Pp), (3, Pp)])
    # kx-major, the three ky taps stacked along K: w2k[kx, ky*Pp + cin, cout].
    w2k = jnp.transpose(w2p, (1, 0, 2, 3)).reshape(3, 3 * Pp, Pp)
    w3p = padc(w3f, [(0, Pp), (1, Cp)])
    b1p = padc(b1, [(1, Pp)])
    b2p = padc(b2, [(1, Pp)])
    b3p = padc(b3, [(1, Cp)])

    kernel = functools.partial(_bottleneck_kernel, TH=TH, W=W, C=Cp, P=Pp)

    # Explicit VMEM budget: double-buffered blocks + weights + scratch + temps.
    blocks = ((TH + 2) * W * Cp * 4 + TH * W * Cp * 4)
    weights = (Cp * Pp + 9 * Pp * Pp + Pp * Cp) * 2 + (2 * Pp + Cp) * 4
    scratch = (TH + 2) * W * Pp * 2
    temps = ((TH + 2) * W * Pp * 4 + 3 * TH * W * Pp * 2
             + 6 * TH * W * Pp * 4 + 2 * TH * W * Cp * 4)
    vmem_bytes = 2 * (blocks + weights) + scratch + temps
    vmem_limit = int(min(64 << 20, max(32 << 20, 2 * vmem_bytes)))

    row_spec = lambda idx_map: pl.BlockSpec((1, 1, W, Cp), idx_map)
    const = lambda shape: pl.BlockSpec(shape, lambda n, i: (0,) * len(shape))

    out = pl.pallas_call(
        kernel,
        out_shape=jax.ShapeDtypeStruct((N, H, W, Cp), jnp.float32),
        grid_spec=pltpu.PrefetchScalarGridSpec(
            num_scalar_prefetch=0,
            grid=(N, nH),
            in_specs=[
                # Halo row above, the tile, halo row below (clamped at the
                # image borders; the kernel zeroes the clamped halo rows).
                row_spec(lambda n, i: (n, jnp.maximum(i * TH - 1, 0), 0, 0)),
                pl.BlockSpec((1, TH, W, Cp), lambda n, i: (n, i, 0, 0)),
                row_spec(lambda n, i: (n, jnp.minimum(i * TH + TH, H - 1), 0, 0)),
                # TODO(synk): pipeline_mode=pl.Buffered(1) on these
                # grid-invariant weights to halve their VMEM footprint.
                const((Cp, Pp)),
                const((3, 3 * Pp, Pp)),
                const((Pp, Cp)),
                const((1, Pp)), const((1, Pp)), const((1, Cp)),
            ],
            out_specs=pl.BlockSpec((1, TH, W, Cp), lambda n, i: (n, i, 0, 0)),
            scratch_shapes=[pltpu.VMEM((TH + 2, W, Pp), jnp.bfloat16)],
        ),
        compiler_params=pltpu.CompilerParams(
            dimension_semantics=("parallel", "parallel"),
            vmem_limit_bytes=vmem_limit),
    )(xp, xp, xp, w1p, w2k, w3p, b1p, b2p, b3p)
    return out if Cp == Cout else out[..., :Cout]


def bottleneck_reference(x_nhwc, params):
    """Pure-JAX NHWC reference using the same BN-folded, bf16-quantized
    weights as the kernel (activations stay f32)."""
    w1, w2, w3, s1, b1, s2, b2, s3, b3 = params
    Cin, P = w1.shape
    Cout = w3.shape[1]
    q = lambda w: w.astype(jnp.bfloat16).astype(jnp.float32)
    w1f = q(w1 * s1)
    w2f = q(w2 * s2.reshape(1, 1, 1, P))
    w3f = q(w3 * s3)

    def conv(x, w):
        return jax.lax.conv_general_dilated(
            x, w, window_strides=(1, 1), padding="SAME",
            dimension_numbers=("NHWC", "HWIO", "NHWC"))

    y = jnp.maximum(conv(x_nhwc, w1f.reshape(1, 1, Cin, P)) + b1, 0.0)
    y = jnp.maximum(conv(y, w2f) + b2, 0.0)
    y = conv(y, w3f.reshape(1, 1, P, Cout)) + b3
    return jnp.maximum(y + x_nhwc, 0.0)


def make_params(key, inplanes, planes, eps=1e-5):
    """Deterministic synthetic parameters. BN in eval form
    (running_mean=0, running_var=1) expressed as per-channel scale/shift."""
    cout = planes * 4
    ks = jax.random.split(key, 9)
    w1 = jax.random.normal(ks[0], (inplanes, planes), jnp.float32) * 0.1
    w2 = jax.random.normal(ks[1], (3, 3, planes, planes), jnp.float32) * 0.1
    w3 = jax.random.normal(ks[2], (planes, cout), jnp.float32) * 0.1
    g1 = 1.0 + 0.1 * jax.random.normal(ks[3], (1, planes), jnp.float32)
    b1 = 0.1 * jax.random.normal(ks[4], (1, planes), jnp.float32)
    g2 = 1.0 + 0.1 * jax.random.normal(ks[5], (1, planes), jnp.float32)
    b2 = 0.1 * jax.random.normal(ks[6], (1, planes), jnp.float32)
    g3 = 1.0 + 0.1 * jax.random.normal(ks[7], (1, cout), jnp.float32)
    b3 = 0.1 * jax.random.normal(ks[8], (1, cout), jnp.float32)
    inv = 1.0 / jnp.sqrt(1.0 + eps)            # running_var = 1, mean = 0
    return (w1, w2, w3,
            g1 * inv, b1, g2 * inv, b2, g3 * inv, b3)


if __name__ == "__main__":
    key = jax.random.PRNGKey(0)
    N, H, W = 2, 16, 16
    planes = 32
    inplanes = planes * 4      # 128: residual add (no downsample), lane-aligned

    kx_key, kp_key = jax.random.split(key)
    # PyTorch input would be NCHW (2, 128, 16, 16); the kernel uses NHWC.
    x_nchw = jax.random.normal(kx_key, (N, inplanes, H, W), jnp.float32)
    x_nhwc = jnp.transpose(x_nchw, (0, 2, 3, 1))

    params = make_params(kp_key, inplanes, planes)

    out = jax.block_until_ready(bottleneck_forward(x_nhwc, params, th=8))
    ref = bottleneck_reference(x_nhwc, params)

    assert out.shape == (N, H, W, inplanes)
    err = float(jnp.max(jnp.abs(out - ref)))
    # bf16 MXU inputs (f32 accumulation) -> bf16-level tolerance.
    assert jnp.allclose(out, ref, rtol=2e-2, atol=2e-2), f"max err {err}"
    print("KERNEL_OK")
</pallas_src>

<mosaic_0001>
module attributes {stable_mosaic.version = 11 : i64} {
  func.func @_bottleneck_kernel(%arg0: i32, %arg1: i32, %arg2: memref<1x1x16x128xf32, #tpu.memory_space<vmem>>, %arg3: memref<1x8x16x128xf32, #tpu.memory_space<vmem>>, %arg4: memref<1x1x16x128xf32, #tpu.memory_space<vmem>>, %arg5: memref<128x128xbf16, #tpu.memory_space<vmem>>, %arg6: memref<3x384x128xbf16, #tpu.memory_space<vmem>>, %arg7: memref<128x128xbf16, #tpu.memory_space<vmem>>, %arg8: memref<1x128xf32, #tpu.memory_space<vmem>>, %arg9: memref<1x128xf32, #tpu.memory_space<vmem>>, %arg10: memref<1x128xf32, #tpu.memory_space<vmem>>, %arg11: memref<1x8x16x128xf32, #tpu.memory_space<vmem>>, %arg12: memref<10x16x128xbf16, #tpu.memory_space<vmem>>) attributes {dimension_semantics = [#tpu.dimension_semantics<parallel>, #tpu.dimension_semantics<parallel>], iteration_bounds = array<i64: 2, 2>, scalar_prefetch = 0 : i64, scratch_operands = 1 : i64, tpu.core_type = #tpu.core_type<tc>, window_params = [{transform_indices = @transform_0, window_bounds = array<i64: 1, 1, 16, 128>}, {transform_indices = @transform_1, window_bounds = array<i64: 1, 8, 16, 128>}, {transform_indices = @transform_2, window_bounds = array<i64: 1, 1, 16, 128>}, {pipeline_mode = #tpu.pipeline_mode<synchronous>, transform_indices = @transform_3, window_bounds = array<i64: 128, 128>}, {pipeline_mode = #tpu.pipeline_mode<synchronous>, transform_indices = @transform_4, window_bounds = array<i64: 3, 384, 128>}, {pipeline_mode = #tpu.pipeline_mode<synchronous>, transform_indices = @transform_5, window_bounds = array<i64: 128, 128>}, {pipeline_mode = #tpu.pipeline_mode<synchronous>, transform_indices = @transform_6, window_bounds = array<i64: 1, 128>}, {pipeline_mode = #tpu.pipeline_mode<synchronous>, transform_indices = @transform_7, window_bounds = array<i64: 1, 128>}, {pipeline_mode = #tpu.pipeline_mode<synchronous>, transform_indices = @transform_8, window_bounds = array<i64: 1, 128>}, {transform_indices = @transform_9, window_bounds = array<i64: 1, 8, 16, 128>}]} {
    %c0 = arith.constant 0 : index
    %c0_0 = arith.constant 0 : index
    %c0_1 = arith.constant 0 : index
    %c0_2 = arith.constant 0 : index
    %0 = vector.load %arg2[%c0, %c0_0, %c0_1, %c0_2] : memref<1x1x16x128xf32, #tpu.memory_space<vmem>>, vector<1x1x16x128xf32>
    %1 = vector.shape_cast %0 : vector<1x1x16x128xf32> to vector<1x16x128xf32>
    %2 = arith.truncf %1 : vector<1x16x128xf32> to vector<1x16x128xbf16>
    %c0_3 = arith.constant 0 : index
    %c0_4 = arith.constant 0 : index
    %c0_5 = arith.constant 0 : index
    %c0_6 = arith.constant 0 : index
    %3 = vector.load %arg3[%c0_3, %c0_4, %c0_5, %c0_6] : memref<1x8x16x128xf32, #tpu.memory_space<vmem>>, vector<1x8x16x128xf32>
    %4 = vector.shape_cast %3 : vector<1x8x16x128xf32> to vector<8x16x128xf32>
    %5 = arith.truncf %4 : vector<8x16x128xf32> to vector<8x16x128xbf16>
    %c0_7 = arith.constant 0 : index
    %c0_8 = arith.constant 0 : index
    %c0_9 = arith.constant 0 : index
    %c0_10 = arith.constant 0 : index
    %6 = vector.load %arg4[%c0_7, %c0_8, %c0_9, %c0_10] : memref<1x1x16x128xf32, #tpu.memory_space<vmem>>, vector<1x1x16x128xf32>
    %7 = vector.shape_cast %6 : vector<1x1x16x128xf32> to vector<1x16x128xf32>
    %8 = arith.truncf %7 : vector<1x16x128xf32> to vector<1x16x128xbf16>
    %9 = tpu.concatenate %2, %5, %8 in 0 : vector<1x16x128xbf16>, vector<8x16x128xbf16>, vector<1x16x128xbf16> -> vector<10x16x128xbf16>
    %10 = vector.shape_cast %9 : vector<10x16x128xbf16> to vector<160x128xbf16>
    %c0_11 = arith.constant 0 : index
    %c0_12 = arith.constant 0 : index
    %11 = vector.load %arg5[%c0_11, %c0_12] : memref<128x128xbf16, #tpu.memory_space<vmem>>, vector<128x128xbf16>
    %cst = arith.constant dense<0.000000e+00> : vector<160x128xf32>
    %12 = tpu.matmul %10, %11, %cst {dimension_numbers = #tpu.dot_dimension_numbers<[1], [0], [0], [1], [0, 0, 1, 1], [], []>} : vector<160x128xbf16>, vector<128x128xbf16>, vector<160x128xf32> -> vector<160x128xf32>
    %c0_13 = arith.constant 0 : index
    %c0_14 = arith.constant 0 : index
    %13 = vector.load %arg8[%c0_13, %c0_14] : memref<1x128xf32, #tpu.memory_space<vmem>>, vector<1x128xf32>
    %14 = vector.broadcast %13 : vector<1x128xf32> to vector<160x128xf32>
    %15 = arith.addf %12, %14 : vector<160x128xf32>
    %cst_15 = arith.constant 0.000000e+00 : f32
    %16 = vector.broadcast %cst_15 : f32 to vector<160x128xf32>
    %17 = arith.maximumf %15, %16 : vector<160x128xf32>
    %18 = vector.shape_cast %17 : vector<160x128xf32> to vector<10x16x128xf32>
    %19 = arith.truncf %18 : vector<10x16x128xf32> to vector<10x16x128xbf16>
    %c0_16 = arith.constant 0 : index
    %c0_17 = arith.constant 0 : index
    %c0_18 = arith.constant 0 : index
    %20 = vector.load %arg12[%c0_16, %c0_17, %c0_18] : memref<10x16x128xbf16, #tpu.memory_space<vmem>>, vector<10x16x128xbf16>
    tpu.vector_store %arg12[%c0_16, %c0_17, %c0_18], %19 {strides = array<i32>} : memref<10x16x128xbf16, #tpu.memory_space<vmem>>, vector<10x16x128xbf16>,
    %c0_i32 = arith.constant 0 : i32
    %21 = arith.cmpi eq, %arg1, %c0_i32 : i32
    %22 = arith.extui %21 : i1 to i32
    %c0_i32_19 = arith.constant 0 : i32
    %23 = arith.cmpi ne, %22, %c0_i32_19 : i32
    scf.if %23 {
      %cst_66 = arith.constant 0.000000e+00 : bf16
      %91 = vector.broadcast %cst_66 : bf16 to vector<16x128xbf16>
      %c0_67 = arith.constant 0 : index
      %c0_68 = arith.constant 0 : index
      %c0_69 = arith.constant 0 : index
      %92 = vector.load %arg12[%c0_67, %c0_68, %c0_69] : memref<10x16x128xbf16, #tpu.memory_space<vmem>>, vector<1x16x128xbf16>
      %93 = vector.shape_cast %92 : vector<1x16x128xbf16> to vector<16x128xbf16>
      %94 = vector.shape_cast %91 : vector<16x128xbf16> to vector<1x16x128xbf16>
      tpu.vector_store %arg12[%c0_67, %c0_68, %c0_69], %94 {strides = array<i32>} : memref<10x16x128xbf16, #tpu.memory_space<vmem>>, vector<1x16x128xbf16>,
    } else {
    }
    %c1_i32 = arith.constant 1 : i32
    %24 = arith.cmpi eq, %arg1, %c1_i32 : i32
    %25 = arith.extui %24 : i1 to i32
    %c0_i32_20 = arith.constant 0 : i32
    %26 = arith.cmpi ne, %25, %c0_i32_20 : i32
    scf.if %26 {
      %cst_66 = arith.constant 0.000000e+00 : bf16
      %91 = vector.broadcast %cst_66 : bf16 to vector<16x128xbf16>
      %c9 = arith.constant 9 : index
      %c0_67 = arith.constant 0 : index
      %c0_68 = arith.constant 0 : index
      %92 = vector.load %arg12[%c9, %c0_67, %c0_68] : memref<10x16x128xbf16, #tpu.memory_space<vmem>>, vector<1x16x128xbf16>
      %93 = vector.shape_cast %92 : vector<1x16x128xbf16> to vector<16x128xbf16>
      %94 = vector.shape_cast %91 : vector<16x128xbf16> to vector<1x16x128xbf16>
      tpu.vector_store %arg12[%c9, %c0_67, %c0_68], %94 {strides = array<i32>} : memref<10x16x128xbf16, #tpu.memory_space<vmem>>, vector<1x16x128xbf16>,
    } else {
    }
    %c0_21 = arith.constant 0 : index
    %c0_22 = arith.constant 0 : index
    %c0_23 = arith.constant 0 : index
    %27 = vector.load %arg12[%c0_21, %c0_22, %c0_23] : memref<10x16x128xbf16, #tpu.memory_space<vmem>>, vector<8x16x128xbf16>
    %c1 = arith.constant 1 : index
    %c0_24 = arith.constant 0 : index
    %c0_25 = arith.constant 0 : index
    %28 = vector.load %arg12[%c1, %c0_24, %c0_25] : memref<10x16x128xbf16, #tpu.memory_space<vmem>>, vector<8x16x128xbf16>
    %c2 = arith.constant 2 : index
    %c0_26 = arith.constant 0 : index
    %c0_27 = arith.constant 0 : index
    %29 = vector.load %arg12[%c2, %c0_26, %c0_27] : memref<10x16x128xbf16, #tpu.memory_space<vmem>>, vector<8x16x128xbf16>
    %30 = tpu.concatenate %27, %28, %29 in 2 : vector<8x16x128xbf16>, vector<8x16x128xbf16>, vector<8x16x128xbf16> -> vector<8x16x384xbf16>
    %31 = vector.shape_cast %30 : vector<8x16x384xbf16> to vector<128x384xbf16>
    %c0_28 = arith.constant 0 : index
    %c0_29 = arith.constant 0 : index
    %c0_30 = arith.constant 0 : index
    %32 = vector.load %arg6[%c0_28, %c0_29, %c0_30] : memref<3x384x128xbf16, #tpu.memory_space<vmem>>, vector<1x384x128xbf16>
    %33 = vector.shape_cast %32 : vector<1x384x128xbf16> to vector<384x128xbf16>
    %cst_31 = arith.constant dense<0.000000e+00> : vector<128x128xf32>
    %34 = tpu.matmul %31, %33, %cst_31 {dimension_numbers = #tpu.dot_dimension_numbers<[1], [0], [0], [1], [0, 0, 1, 1], [], []>} : vector<128x384xbf16>, vector<384x128xbf16>, vector<128x128xf32> -> vector<128x128xf32>
    %c1_32 = arith.constant 1 : index
    %c0_33 = arith.constant 0 : index
    %c0_34 = arith.constant 0 : index
    %35 = vector.load %arg6[%c1_32, %c0_33, %c0_34] : memref<3x384x128xbf16, #tpu.memory_space<vmem>>, vector<1x384x128xbf16>
    %36 = vector.shape_cast %35 : vector<1x384x128xbf16> to vector<384x128xbf16>
    %cst_35 = arith.constant dense<0.000000e+00> : vector<128x128xf32>
    %37 = tpu.matmul %31, %36, %cst_35 {dimension_numbers = #tpu.dot_dimension_numbers<[1], [0], [0], [1], [0, 0, 1, 1], [], []>} : vector<128x384xbf16>, vector<384x128xbf16>, vector<128x128xf32> -> vector<128x128xf32>
    %c2_36 = arith.constant 2 : index
    %c0_37 = arith.constant 0 : index
    %c0_38 = arith.constant 0 : index
    %38 = vector.load %arg6[%c2_36, %c0_37, %c0_38] : memref<3x384x128xbf16, #tpu.memory_space<vmem>>, vector<1x384x128xbf16>
    %39 = vector.shape_cast %38 : vector<1x384x128xbf16> to vector<384x128xbf16>
    %cst_39 = arith.constant dense<0.000000e+00> : vector<128x128xf32>
    %40 = tpu.matmul %31, %39, %cst_39 {dimension_numbers = #tpu.dot_dimension_numbers<[1], [0], [0], [1], [0, 0, 1, 1], [], []>} : vector<128x384xbf16>, vector<384x128xbf16>, vector<128x128xf32> -> vector<128x128xf32>
    %41 = tpu.iota {dimensions = array<i32: 0>} : vector<128x128xi32>
    %c16_i32 = arith.constant 16 : i32
    %c0_i32_40 = arith.constant 0 : i32
    %42 = arith.cmpi eq, %c16_i32, %c0_i32_40 : i32
    %c1_i32_41 = arith.constant 1 : i32
    %43 = arith.select %42, %c1_i32_41, %c16_i32 : i32
    %44 = vector.broadcast %43 : i32 to vector<128x128xi32>
    %45 = arith.remsi %41, %44 : vector<128x128xi32>
    %c0_i32_42 = arith.constant 0 : i32
    %46 = vector.broadcast %c0_i32_42 : i32 to vector<128x128xi32>
    %47 = arith.cmpi ne, %45, %46 : vector<128x128xi32>
    %c0_i32_43 = arith.constant 0 : i32
    %48 = vector.broadcast %c0_i32_43 : i32 to vector<128x128xi32>
    %49 = arith.cmpi slt, %45, %48 : vector<128x128xi32>
    %c0_i32_44 = arith.constant 0 : i32
    %50 = arith.cmpi slt, %43, %c0_i32_44 : i32
    %51 = vector.broadcast %50 : i1 to vector<128x128xi1>
    %52 = vector.broadcast %51 : vector<128x128xi1> to vector<128x128xi1>
    %53 = arith.xori %49, %52 : vector<128x128xi1>
    %54 = arith.andi %53, %47 : vector<128x128xi1>
    %55 = vector.broadcast %43 : i32 to vector<128x128xi32>
    %56 = arith.addi %45, %55 : vector<128x128xi32>
    %57 = arith.select %54, %56, %45 : vector<128x128xi1>, vector<128x128xi32>
    %c0_i32_45 = arith.constant 0 : i32
    %58 = vector.broadcast %c0_i32_45 : i32 to vector<128x128xi32>
    %59 = arith.cmpi sgt, %57, %58 : vector<128x128xi32>
    %c1_i32_46 = arith.constant 1 : i32
    %60 = tpu.dynamic_rotate %34 by %c1_i32_46 dim 0 : vector<128x128xf32>, i32 -> vector<128x128xf32>
    %cst_47 = arith.constant 0.000000e+00 : f32
    %61 = vector.broadcast %cst_47 : f32 to vector<128x128xf32>
    %62 = arith.select %59, %60, %61 : vector<128x128xi1>, vector<128x128xf32>
    %63 = arith.addf %37, %62 : vector<128x128xf32>
    %c15_i32 = arith.constant 15 : i32
    %64 = vector.broadcast %c15_i32 : i32 to vector<128x128xi32>
    %65 = arith.cmpi slt, %57, %64 : vector<128x128xi32>
    %c127_i32 = arith.constant 127 : i32
    %66 = tpu.dynamic_rotate %40 by %c127_i32 dim 0 : vector<128x128xf32>, i32 -> vector<128x128xf32>
    %cst_48 = arith.constant 0.000000e+00 : f32
    %67 = vector.broadcast %cst_48 : f32 to vector<128x128xf32>
    %68 = arith.select %65, %66, %67 : vector<128x128xi1>, vector<128x128xf32>
    %69 = arith.addf %63, %68 : vector<128x128xf32>
    %c0_49 = arith.constant 0 : index
    %c0_50 = arith.constant 0 : index
    %70 = vector.load %arg9[%c0_49, %c0_50] : memref<1x128xf32, #tpu.memory_space<vmem>>, vector<1x128xf32>
    %71 = vector.broadcast %70 : vector<1x128xf32> to vector<128x128xf32>
    %72 = arith.addf %69, %71 : vector<128x128xf32>
    %cst_51 = arith.constant 0.000000e+00 : f32
    %73 = vector.broadcast %cst_51 : f32 to vector<128x128xf32>
    %74 = arith.maximumf %72, %73 : vector<128x128xf32>
    %75 = arith.truncf %74 : vector<128x128xf32> to vector<128x128xbf16>
    %c0_52 = arith.constant 0 : index
    %c0_53 = arith.constant 0 : index
    %76 = vector.load %arg7[%c0_52, %c0_53] : memref<128x128xbf16, #tpu.memory_space<vmem>>, vector<128x128xbf16>
    %cst_54 = arith.constant dense<0.000000e+00> : vector<128x128xf32>
    %77 = tpu.matmul %75, %76, %cst_54 {dimension_numbers = #tpu.dot_dimension_numbers<[1], [0], [0], [1], [0, 0, 1, 1], [], []>} : vector<128x128xbf16>, vector<128x128xbf16>, vector<128x128xf32> -> vector<128x128xf32>
    %c0_55 = arith.constant 0 : index
    %c0_56 = arith.constant 0 : index
    %78 = vector.load %arg10[%c0_55, %c0_56] : memref<1x128xf32, #tpu.memory_space<vmem>>, vector<1x128xf32>
    %79 = vector.broadcast %78 : vector<1x128xf32> to vector<128x128xf32>
    %80 = arith.addf %77, %79 : vector<128x128xf32>
    %c0_57 = arith.constant 0 : index
    %c0_58 = arith.constant 0 : index
    %c0_59 = arith.constant 0 : index
    %c0_60 = arith.constant 0 : index
    %81 = vector.load %arg3[%c0_57, %c0_58, %c0_59, %c0_60] : memref<1x8x16x128xf32, #tpu.memory_space<vmem>>, vector<1x8x16x128xf32>
    %82 = vector.shape_cast %81 : vector<1x8x16x128xf32> to vector<8x16x128xf32>
    %83 = vector.shape_cast %82 : vector<8x16x128xf32> to vector<128x128xf32>
    %84 = arith.addf %80, %83 : vector<128x128xf32>
    %cst_61 = arith.constant 0.000000e+00 : f32
    %85 = vector.broadcast %cst_61 : f32 to vector<128x128xf32>
    %86 = arith.maximumf %84, %85 : vector<128x128xf32>
    %87 = vector.shape_cast %86 : vector<128x128xf32> to vector<8x16x128xf32>
    %c0_62 = arith.constant 0 : index
    %c0_63 = arith.constant 0 : index
    %c0_64 = arith.constant 0 : index
    %c0_65 = arith.constant 0 : index
    %88 = vector.load %arg11[%c0_62, %c0_63, %c0_64, %c0_65] : memref<1x8x16x128xf32, #tpu.memory_space<vmem>>, vector<1x8x16x128xf32>
    %89 = vector.shape_cast %88 : vector<1x8x16x128xf32> to vector<8x16x128xf32>
    %90 = vector.shape_cast %87 : vector<8x16x128xf32> to vector<1x8x16x128xf32>
    tpu.vector_store %arg11[%c0_62, %c0_63, %c0_64, %c0_65], %90 {strides = array<i32>} : memref<1x8x16x128xf32, #tpu.memory_space<vmem>>, vector<1x8x16x128xf32>,
    return
  }
  func.func @transform_0(%arg0: i32, %arg1: i32) -> (i32, i32, i32, i32) {
    %c8_i32 = arith.constant 8 : i32
    %0 = arith.muli %arg1, %c8_i32 : i32
    %c1_i32 = arith.constant 1 : i32
    %1 = arith.subi %0, %c1_i32 : i32
    %c0_i32 = arith.constant 0 : i32
    %2 = arith.maxsi %1, %c0_i32 : i32
    %c0_i32_0 = arith.constant 0 : i32
    %c0_i32_1 = arith.constant 0 : i32
    %c0_i32_2 = arith.constant 0 : i32
    return %arg0, %2, %c0_i32_0, %c0_i32_1 : i32, i32, i32, i32
  }
  func.func @transform_1(%arg0: i32, %arg1: i32) -> (i32, i32, i32, i32) {
    %c0_i32 = arith.constant 0 : i32
    %c0_i32_0 = arith.constant 0 : i32
    %c0_i32_1 = arith.constant 0 : i32
    return %arg0, %arg1, %c0_i32, %c0_i32_0 : i32, i32, i32, i32
  }
  func.func @transform_2(%arg0: i32, %arg1: i32) -> (i32, i32, i32, i32) {
    %c8_i32 = arith.constant 8 : i32
    %0 = arith.muli %arg1, %c8_i32 : i32
    %c8_i32_0 = arith.constant 8 : i32
    %1 = arith.addi %0, %c8_i32_0 : i32
    %c15_i32 = arith.constant 15 : i32
    %2 = arith.minsi %1, %c15_i32 : i32
    %c0_i32 = arith.constant 0 : i32
    %c0_i32_1 = arith.constant 0 : i32
    %c0_i32_2 = arith.constant 0 : i32
    return %arg0, %2, %c0_i32, %c0_i32_1 : i32, i32, i32, i32
  }
  func.func @transform_3(%arg0: i32, %arg1: i32) -> (i32, i32) {
    %c0_i32 = arith.constant 0 : i32
    %c0_i32_0 = arith.constant 0 : i32
    %c0_i32_1 = arith.constant 0 : i32
    return %c0_i32, %c0_i32_0 : i32, i32
  }
  func.func @transform_4(%arg0: i32, %arg1: i32) -> (i32, i32, i32) {
    %c0_i32 = arith.constant 0 : i32
    %c0_i32_0 = arith.constant 0 : i32
    %c0_i32_1 = arith.constant 0 : i32
    %c0_i32_2 = arith.constant 0 : i32
    return %c0_i32, %c0_i32_0, %c0_i32_1 : i32, i32, i32
  }
  func.func @transform_5(%arg0: i32, %arg1: i32) -> (i32, i32) {
    %c0_i32 = arith.constant 0 : i32
    %c0_i32_0 = arith.constant 0 : i32
    %c0_i32_1 = arith.constant 0 : i32
    return %c0_i32, %c0_i32_0 : i32, i32
  }
  func.func @transform_6(%arg0: i32, %arg1: i32) -> (i32, i32) {
    %c0_i32 = arith.constant 0 : i32
    %c0_i32_0 = arith.constant 0 : i32
    %c0_i32_1 = arith.constant 0 : i32
    return %c0_i32, %c0_i32_0 : i32, i32
  }
  func.func @transform_7(%arg0: i32, %arg1: i32) -> (i32, i32) {
    %c0_i32 = arith.constant 0 : i32
    %c0_i32_0 = arith.constant 0 : i32
    %c0_i32_1 = arith.constant 0 : i32
    return %c0_i32, %c0_i32_0 : i32, i32
  }
  func.func @transform_8(%arg0: i32, %arg1: i32) -> (i32, i32) {
    %c0_i32 = arith.constant 0 : i32
    %c0_i32_0 = arith.constant 0 : i32
    %c0_i32_1 = arith.constant 0 : i32
    return %c0_i32, %c0_i32_0 : i32, i32
  }
  func.func @transform_9(%arg0: i32, %arg1: i32) -> (i32, i32, i32, i32) {
    %c0_i32 = arith.constant 0 : i32
    %c0_i32_0 = arith.constant 0 : i32
    %c0_i32_1 = arith.constant 0 : i32
    return %arg0, %arg1, %c0_i32, %c0_i32_0 : i32, i32, i32, i32
  }
}

</mosaic_0001>

<llo_original>
// kernel: tpu_custom_call.1
$region0: #{tpu_custom_call.1}
  #allocation0 [shape = 'u32[]', space=smem, size = 0x4, offset = 0x4, fixed_abs, tag = 'smem constant byte address 0x4 - core index']
  #allocation1 [shape = 'u32[144,128]{1,0:T(1,128)}', space=vmem, size = 0x12000, scoped, tag = 'internal scratch']
  #allocation2 [shape = 'bf16[10,16,128]{2,1,0:T(16,128)(2,1)}', space=vmem, size = 0xa000, scoped, tag = 'scratch operand']
  %s0 = inlined_call_operand.hbm [shape: f32[2,16,16,128], index: 0, kind: input, shape index: {}]
  %s1 = inlined_call_operand.hbm [shape: f32[2,16,16,128], index: 1, kind: input, shape index: {}]
  %s2 = inlined_call_operand.hbm [shape: f32[2,16,16,128], index: 2, kind: input, shape index: {}]
  %s3 = inlined_call_operand.hbm [shape: bf16[128,128], index: 3, kind: input, shape index: {}]
  %s4 = inlined_call_operand.hbm [shape: bf16[3,384,128], index: 4, kind: input, shape index: {}]
  %s5 = inlined_call_operand.hbm [shape: bf16[128,128], index: 5, kind: input, shape index: {}]
  %s6 = inlined_call_operand.vmem [shape: f32[1,128], index: 6, kind: input, shape index: {}]
  %s7 = inlined_call_operand.vmem [shape: f32[1,128], index: 7, kind: input, shape index: {}]
  %s8 = inlined_call_operand.vmem [shape: f32[1,128], index: 8, kind: input, shape index: {}]
  %s9 = inlined_call_operand.hbm [shape: f32[2,16,16,128], index: 9, kind: output, shape index: {}]
  %s10 = sld [smem:[#allocation0]]
  $region101: #{tpu_custom_call.1} parent=0
    _
  %s12 = ssub.s32 1, %s10
  %s13 = scalar_select 0, %s12, %s10
  $region1: #{tpu_custom_call.1} parent=0
    #allocation3 [shape = 'u8[16384]{0}', space=vmem, size = 0x4000, scoped, tag = 'input window, operand 0']
    #allocation4 [shape = 's32[2]{0}', space=sflag, size = 0x8, scoped, tag = 'scoped memory for tpu_custom_call.1']
    #allocation5 [shape = 's32[2]{0}', space=sflag, size = 0x8, scoped, tag = 'scoped memory for tpu_custom_call.1']
    #allocation6 [shape = 'u8[131072]{0}', space=vmem, size = 0x20000, scoped, tag = 'input window, operand 1']
    #allocation7 [shape = 's32[2]{0}', space=sflag, size = 0x8, scoped, tag = 'scoped memory for tpu_custom_call.1']
    #allocation8 [shape = 'u8[16384]{0}', space=vmem, size = 0x4000, scoped, tag = 'input window, operand 2']
    #allocation9 [shape = 'u8[32768]{0}', space=vmem, size = 0x8000, scoped, tag = 'input window, operand 3, single buffered']
    #allocation10 [shape = 's32[1]{0}', space=sflag, size = 0x4, scoped, tag = 'scoped memory for tpu_custom_call.1']
    #allocation11 [shape = 'u8[294912]{0}', space=vmem, size = 0x48000, scoped, tag = 'input window, operand 4, single buffered']
    #allocation12 [shape = 'u8[32768]{0}', space=vmem, size = 0x8000, scoped, tag = 'input window, operand 5, single buffered']
    #allocation13 [shape = 's32[1]{0}', space=sflag, size = 0x4, scoped, tag = 'scoped memory for tpu_custom_call.1']
    #allocation14 [shape = 'u8[131072]{0}', space=vmem, size = 0x20000, scoped, tag = 'output window, operand 0']
    %14 = vsyncpa [#allocation4], 0
    %s15 = scalar_lea.sflag [#allocation4], 1
    %16 = vsyncpa %s15, 0
    %17 = vsyncpa [#allocation7], 0
    %s18 = scalar_lea.sflag [#allocation7], 1
    %19 = vsyncpa %s18, 0
    %20 = vsyncpa [#allocation10], 0
    %21 = vsyncpa [#allocation13], 0
    %22 = vsyncpa [#allocation5], 0
    %s23 = scalar_lea.sflag [#allocation5], 1
    %24 = vsyncpa %s23, 0
    loop: start=0, step=1, limit=6
    $region2: #{tpu_custom_call.1} parent=1 // loop_pre_header
      _
    $region3: #{tpu_custom_call.1} parent=1 // loop_header
      %s26 = sphi 0, %s30
      %p27 = scmp.ge.s32.totalorder %s26, 6
      %s33 = sphi 0, %s45
      %s34 = sphi 0, %s41
      %s35 = sphi 0, %s33
      %s36 = sphi 0, %s34
      %s37 = sphi 0, %s35
      %s38 = sphi 0, %s36
      %s58 = sphi 0, %s60
      %s61 = sphi 0, %s58
      %s62 = sphi 0, %s61
      %s78 = sphi 0, %s62
      %s86 = sphi 0, %s88
      %s89 = sphi 0, %s86
      %s90 = sphi 0, %s89
      %s106 = sphi 0, %s90
      %s122 = sphi 0, %s124
      %s125 = sphi 0, %s122
      %s126 = sphi 0, %s125
      %s142 = sphi 0, %s126
      %s146 = sphi 0, %s146
      %s148 = sphi 0, %s146
      %s149 = sphi 0, %s148
      %s163 = sphi 0, %s149
      %s167 = sphi 0, %s167
      %s169 = sphi 0, %s167
      %s170 = sphi 0, %s169
      %s184 = sphi 0, %s170
      %s188 = sphi 0, %s188
      %s190 = sphi 0, %s188
      %s191 = sphi 0, %s190
      %s205 = sphi 0, %s191
      %s209 = sphi 0, %s209
      %s211 = sphi 0, %s209
      %s212 = sphi 0, %s211
      %s226 = sphi 0, %s212
      %s230 = sphi 0, %s230
      %s232 = sphi 0, %s230
      %s233 = sphi 0, %s232
      %s247 = sphi 0, %s233
      %s251 = sphi 0, %s251
      %s253 = sphi 0, %s251
      %s254 = sphi 0, %s253
      %s268 = sphi 0, %s254
      %s276 = sphi 0, %s278
      %s279 = sphi 0, %s276
      %s280 = sphi 0, %s279
      %s296 = sphi 0, %s280
    $region4: #{tpu_custom_call.1} parent=1 // loop_header_branch
      %29 = sbr.rel (%p27) target = $region8
    $region5: #{tpu_custom_call.1} parent=1 // loop_body
      %s31 = ssub.s32 %s26, 1
      %s32 = ssub.s32 %s26, 2
      %s39 = sadd.s32 1, %s34
      %p40 = scmp.ge.s32.totalorder %s39, 2
      %s41 = scalar_select %p40, 0, %s39
      %s42 = sadd.s32 1, %s33
      %s43 = scalar_select %p40, %s42, %s33
      %p44 = scmp.ge.s32.totalorder %s43, 2
      %s45 = scalar_select %p44, 0, %s43
      %s46 = smul.u32 %s34, 8
      %s47 = ssub.s32 %s46, 1
      %p48 = scmp.gt.s32.totalorder %s47, 0
      %s49 = scalar_select %p48, %s47, 0
      %s50 = smul.u32 %s41, 8
      %s51 = ssub.s32 %s50, 1
      %p52 = scmp.gt.s32.totalorder %s51, 0
      %s53 = scalar_select %p52, %s51, 0
      %s54 = ssub.s32 %s33, %s45
      %s55 = ssub.s32 %s49, %s53
      %s56 = sor.u32 %s54, %s55
      %p57 = scmp.eq.s32.totalorder %s56, 0
      %s59 = sadd.s32 %s58, 1
      %s60 = scalar_select %p57, %s58, %s59
      %p63 = pneg %p57
      %p64 = scmp.eq.s32.totalorder %s26, 3
      %p65 = por %p63, %p64
      %p66 = scmp.ne.s32.totalorder %s58, %s61
      %p67 = scmp.eq.s32.totalorder %s26, 0
      %p68 = por %p66, %p67
      %p69 = scmp.ne.s32.totalorder %s58, %s61
      %p70 = scmp.eq.s32.totalorder %s31, 3
      %p71 = por %p69, %p70
      %p72 = scmp.ne.s32.totalorder %s61, %s62
      %p73 = scmp.eq.s32.totalorder %s31, 0
      %p74 = por %p72, %p73
      %p75 = scmp.ne.s32.totalorder %s61, %s62
      %p76 = scmp.eq.s32.totalorder %s32, 3
      %p77 = por %p75, %p76
      %p79 = scmp.ne.s32.totalorder %s62, %s78
      %p80 = scmp.eq.s32.totalorder %s32, 0
      %p81 = por %p79, %p80
      %s82 = ssub.s32 %s33, %s45
      %s83 = ssub.s32 %s34, %s41
      %s84 = sor.u32 %s82, %s83
      %p85 = scmp.eq.s32.totalorder %s84, 0
      %s87 = sadd.s32 %s86, 1
      %s88 = scalar_select %p85, %s86, %s87
      %p91 = pneg %p85
      %p92 = scmp.eq.s32.totalorder %s26, 3
      %p93 = por %p91, %p92
      %p94 = scmp.ne.s32.totalorder %s86, %s89
      %p95 = scmp.eq.s32.totalorder %s26, 0
      %p96 = por %p94, %p95
      %p97 = scmp.ne.s32.totalorder %s86, %s89
      %p98 = scmp.eq.s32.totalorder %s31, 3
      %p99 = por %p97, %p98
      %p100 = scmp.ne.s32.totalorder %s89, %s90
      %p101 = scmp.eq.s32.totalorder %s31, 0
      %p102 = por %p100, %p101
      %p103 = scmp.ne.s32.totalorder %s89, %s90
      %p104 = scmp.eq.s32.totalorder %s32, 3
      %p105 = por %p103, %p104
      %p107 = scmp.ne.s32.totalorder %s90, %s106
      %p108 = scmp.eq.s32.totalorder %s32, 0
      %p109 = por %p107, %p108
      %s110 = smul.u32 %s34, 8
      %s111 = sadd.s32 %s110, 8
      %p112 = scmp.lt.s32.totalorder %s111, 15
      %s113 = scalar_select %p112, %s111, 15
      %s114 = smul.u32 %s41, 8
      %s115 = sadd.s32 %s114, 8
      %p116 = scmp.lt.s32.totalorder %s115, 15
      %s117 = scalar_select %p116, %s115, 15
      %s118 = ssub.s32 %s33, %s45
      %s119 = ssub.s32 %s113, %s117
      %s120 = sor.u32 %s118, %s119
      %p121 = scmp.eq.s32.totalorder %s120, 0
      %s123 = sadd.s32 %s122, 1
      %s124 = scalar_select %p121, %s122, %s123
      %p127 = pneg %p121
      %p128 = scmp.eq.s32.totalorder %s26, 3
      %p129 = por %p127, %p128
      %p130 = scmp.ne.s32.totalorder %s122, %s125
      %p131 = scmp.eq.s32.totalorder %s26, 0
      %p132 = por %p130, %p131
      %p133 = scmp.ne.s32.totalorder %s122, %s125
      %p134 = scmp.eq.s32.totalorder %s31, 3
      %p135 = por %p133, %p134
      %p136 = scmp.ne.s32.totalorder %s125, %s126
      %p137 = scmp.eq.s32.totalorder %s31, 0
      %p138 = por %p136, %p137
      %p139 = scmp.ne.s32.totalorder %s125, %s126
      %p140 = scmp.eq.s32.totalorder %s32, 3
      %p141 = por %p139, %p140
      %p143 = scmp.ne.s32.totalorder %s126, %s142
      %p144 = scmp.eq.s32.totalorder %s32, 0
      %p145 = por %p143, %p144
      %s147 = sadd.s32 %s146, 1
      %p150 = scmp.eq.s32.totalorder %s26, 3
      %p151 = scmp.ne.s32.totalorder %s146, %s148
      %p152 = scmp.eq.s32.totalorder %s26, 0
      %p153 = por %p151, %p152
      %p154 = scmp.ne.s32.totalorder %s146, %s148
      %p155 = scmp.eq.s32.totalorder %s31, 3
      %p156 = por %p154, %p155
      %p157 = scmp.ne.s32.totalorder %s148, %s149
      %p158 = scmp.eq.s32.totalorder %s31, 0
      %p159 = por %p157, %p158
      %p160 = scmp.ne.s32.totalorder %s148, %s149
      %p161 = scmp.eq.s32.totalorder %s32, 3
      %p162 = por %p160, %p161
      %p164 = scmp.ne.s32.totalorder %s149, %s163
      %p165 = scmp.eq.s32.totalorder %s32, 0
      %p166 = por %p164, %p165
      %s168 = sadd.s32 %s167, 1
      %p171 = scmp.eq.s32.totalorder %s26, 3
      %p172 = scmp.ne.s32.totalorder %s167, %s169
      %p173 = scmp.eq.s32.totalorder %s26, 0
      %p174 = por %p172, %p173
      %p175 = scmp.ne.s32.totalorder %s167, %s169
      %p176 = scmp.eq.s32.totalorder %s31, 3
      %p177 = por %p175, %p176
      %p178 = scmp.ne.s32.totalorder %s169, %s170
      %p179 = scmp.eq.s32.totalorder %s31, 0
      %p180 = por %p178, %p179
      %p181 = scmp.ne.s32.totalorder %s169, %s170
      %p182 = scmp.eq.s32.totalorder %s32, 3
      %p183 = por %p181, %p182
      %p185 = scmp.ne.s32.totalorder %s170, %s184
      %p186 = scmp.eq.s32.totalorder %s32, 0
      %p187 = por %p185, %p186
      %s189 = sadd.s32 %s188, 1
      %p192 = scmp.eq.s32.totalorder %s26, 3
      %p193 = scmp.ne.s32.totalorder %s188, %s190
      %p194 = scmp.eq.s32.totalorder %s26, 0
      %p195 = por %p193, %p194
      %p196 = scmp.ne.s32.totalorder %s188, %s190
      %p197 = scmp.eq.s32.totalorder %s31, 3
      %p198 = por %p196, %p197
      %p199 = scmp.ne.s32.totalorder %s190, %s191
      %p200 = scmp.eq.s32.totalorder %s31, 0
      %p201 = por %p199, %p200
      %p202 = scmp.ne.s32.totalorder %s190, %s191
      %p203 = scmp.eq.s32.totalorder %s32, 3
      %p204 = por %p202, %p203
      %p206 = scmp.ne.s32.totalorder %s191, %s205
      %p207 = scmp.eq.s32.totalorder %s32, 0
      %p208 = por %p206, %p207
      %s210 = sadd.s32 %s209, 1
      %p213 = scmp.eq.s32.totalorder %s26, 3
      %p214 = scmp.ne.s32.totalorder %s209, %s211
      %p215 = scmp.eq.s32.totalorder %s26, 0
      %p216 = por %p214, %p215
      %p217 = scmp.ne.s32.totalorder %s209, %s211
      %p218 = scmp.eq.s32.totalorder %s31, 3
      %p219 = por %p217, %p218
      %p220 = scmp.ne.s32.totalorder %s211, %s212
      %p221 = scmp.eq.s32.totalorder %s31, 0
      %p222 = por %p220, %p221
      %p223 = scmp.ne.s32.totalorder %s211, %s212
      %p224 = scmp.eq.s32.totalorder %s32, 3
      %p225 = por %p223, %p224
      %p227 = scmp.ne.s32.totalorder %s212, %s226
      %p228 = scmp.eq.s32.totalorder %s32, 0
      %p229 = por %p227, %p228
      %s231 = sadd.s32 %s230, 1
      %p234 = scmp.eq.s32.totalorder %s26, 3
      %p235 = scmp.ne.s32.totalorder %s230, %s232
      %p236 = scmp.eq.s32.totalorder %s26, 0
      %p237 = por %p235, %p236
      %p238 = scmp.ne.s32.totalorder %s230, %s232
      %p239 = scmp.eq.s32.totalorder %s31, 3
      %p240 = por %p238, %p239
      %p241 = scmp.ne.s32.totalorder %s232, %s233
      %p242 = scmp.eq.s32.totalorder %s31, 0
      %p243 = por %p241, %p242
      %p244 = scmp.ne.s32.totalorder %s232, %s233
      %p245 = scmp.eq.s32.totalorder %s32, 3
      %p246 = por %p244, %p245
      %p248 = scmp.ne.s32.totalorder %s233, %s247
      %p249 = scmp.eq.s32.totalorder %s32, 0
      %p250 = por %p248, %p249
      %s252 = sadd.s32 %s251, 1
      %p255 = scmp.eq.s32.totalorder %s26, 3
      %p256 = scmp.ne.s32.totalorder %s251, %s253
      %p257 = scmp.eq.s32.totalorder %s26, 0
      %p258 = por %p256, %p257
      %p259 = scmp.ne.s32.totalorder %s251, %s253
      %p260 = scmp.eq.s32.totalorder %s31, 3
      %p261 = por %p259, %p260
      %p262 = scmp.ne.s32.totalorder %s253, %s254
      %p263 = scmp.eq.s32.totalorder %s31, 0
      %p264 = por %p262, %p263
      %p265 = scmp.ne.s32.totalorder %s253, %s254
      %p266 = scmp.eq.s32.totalorder %s32, 3
      %p267 = por %p265, %p266
      %p269 = scmp.ne.s32.totalorder %s254, %s268
      %p270 = scmp.eq.s32.totalorder %s32, 0
      %p271 = por %p269, %p270
      %s272 = ssub.s32 %s33, %s45
      %s273 = ssub.s32 %s34, %s41
      %s274 = sor.u32 %s272, %s273
      %p275 = scmp.eq.s32.totalorder %s274, 0
      %s277 = sadd.s32 %s276, 1
      %s278 = scalar_select %p275, %s276, %s277
      %p281 = pneg %p275
      %p282 = scmp.eq.s32.totalorder %s26, 3
      %p283 = por %p281, %p282
      %p284 = scmp.ne.s32.totalorder %s276, %s279
      %p285 = scmp.eq.s32.totalorder %s26, 0
      %p286 = por %p284, %p285
      %p287 = scmp.ne.s32.totalorder %s276, %s279
      %p288 = scmp.eq.s32.totalorder %s31, 3
      %p289 = por %p287, %p288
      %p290 = scmp.ne.s32.totalorder %s279, %s280
      %p291 = scmp.eq.s32.totalorder %s31, 0
      %p292 = por %p290, %p291
      %p293 = scmp.ne.s32.totalorder %s279, %s280
      %p294 = scmp.eq.s32.totalorder %s32, 3
      %p295 = por %p293, %p294
      %p297 = scmp.ne.s32.totalorder %s280, %s296
      %p298 = scmp.eq.s32.totalorder %s32, 0
      %p299 = por %p297, %p298
      %p300 = scmp.le.s32.totalorder 1, %s26
      %p301 = scmp.lt.s32.totalorder %s26, 5
      %p302 = pnand %p300, %p301
      %p303 = pneg %p302
      // Predicated region
      $region9: #{tpu_custom_call.1} parent=5 // pred_check
        _
      $region10: #{tpu_custom_call.1} parent=5 // pred_check_branch
        %305 = sbr.rel (%p302) target = $region12
      $region11: #{tpu_custom_call.1} parent=5 // pred_region
        %s306 = ssub.s32 %s26, 1
        // Predicated region
        $region13: #{tpu_custom_call.1} parent=11 // pred_check
          %p307 = pneg %p159
        $region14: #{tpu_custom_call.1} parent=11 // pred_check_branch
          %309 = sbr.rel (%p307) target = $region16
        $region15: #{tpu_custom_call.1} parent=11 // pred_region
          %s311 = ssub.s32 1024, 1024
          %312 = vsyncadd [#allocation10], %s311
          %s313 = sshll.u32 [#allocation9], 4
          %s314 = int_to_ptr.vmem [resolvable:$true] %s313
          %319 = dma.hbm_to_vmem [thread:$0]  %s3, 1024, %s314, [#allocation10], 64, 64, 4
        $region16: #{tpu_custom_call.1} parent=11 // pred_fallthru
          _
        // Predicated region
        $region17: #{tpu_custom_call.1} parent=11 // pred_check
          %p320 = pneg %p180
        $region18: #{tpu_custom_call.1} parent=11 // pred_check_branch
          %322 = sbr.rel (%p320) target = $region20
        $region19: #{tpu_custom_call.1} parent=11 // pred_region
          %s324 = ssub.s32 9216, 9216
          %325 = vsyncadd [#allocation10], %s324
          %s326 = sshll.u32 [#allocation11], 4
          %s327 = int_to_ptr.vmem [resolvable:$true] %s326
          %332 = dma.hbm_to_vmem [thread:$0]  %s4, 9216, %s327, [#allocation10], 64, 64, 4
        $region20: #{tpu_custom_call.1} parent=11 // pred_fallthru
          _
        // Predicated region
        $region21: #{tpu_custom_call.1} parent=11 // pred_check
          %p333 = pneg %p201
        $region22: #{tpu_custom_call.1} parent=11 // pred_check_branch
          %335 = sbr.rel (%p333) target = $region24
        $region23: #{tpu_custom_call.1} parent=11 // pred_region
          %s337 = ssub.s32 1024, 1024
          %338 = vsyncadd [#allocation13], %s337
          %s339 = sshll.u32 [#allocation12], 4
          %s340 = int_to_ptr.vmem [resolvable:$true] %s339
          %345 = dma.hbm_to_vmem [thread:$0]  %s5, 1024, %s340, [#allocation13], 64, 64, 4
        $region24: #{tpu_custom_call.1} parent=11 // pred_fallthru
          _
        // Predicated region
        $region25: #{tpu_custom_call.1} parent=11 // pred_check
          %p346 = pneg %p222
        $region26: #{tpu_custom_call.1} parent=11 // pred_check_branch
          %348 = sbr.rel (%p346) target = $region28
        $region27: #{tpu_custom_call.1} parent=11 // pred_region
          _
        $region28: #{tpu_custom_call.1} parent=11 // pred_fallthru
          _
        // Predicated region
        $region29: #{tpu_custom_call.1} parent=11 // pred_check
          %p349 = pneg %p243
        $region30: #{tpu_custom_call.1} parent=11 // pred_check_branch
          %351 = sbr.rel (%p349) target = $region32
        $region31: #{tpu_custom_call.1} parent=11 // pred_region
          _
        $region32: #{tpu_custom_call.1} parent=11 // pred_fallthru
          _
        // Predicated region
        $region33: #{tpu_custom_call.1} parent=11 // pred_check
          %p352 = pneg %p264
        $region34: #{tpu_custom_call.1} parent=11 // pred_check_branch
          %354 = sbr.rel (%p352) target = $region36
        $region35: #{tpu_custom_call.1} parent=11 // pred_region
          _
        $region36: #{tpu_custom_call.1} parent=11 // pred_fallthru
          _
      $region12: #{tpu_custom_call.1} parent=5 // pred_fallthru
        _
      %p355 = scmp.lt.s32.totalorder %s26, 4
      // Predicated region
      $region37: #{tpu_custom_call.1} parent=5 // pred_check
        %p356 = pneg %p355
      $region38: #{tpu_custom_call.1} parent=5 // pred_check_branch
        %358 = sbr.rel (%p356) target = $region40
      $region39: #{tpu_custom_call.1} parent=5 // pred_region
        // Predicated region
        $region41: #{tpu_custom_call.1} parent=39 // pred_check
          %p359 = pneg %p68
        $region42: #{tpu_custom_call.1} parent=39 // pred_check_branch
          %361 = sbr.rel (%p359) target = $region44
        $region43: #{tpu_custom_call.1} parent=39 // pred_region
          %s362 = sand.u32 %s58, 1
          %s363 = scalar_lea.sflag [#allocation4], %s362
          %s364 = sand.u32 %s58, 1
          %s365 = smul.addr %s364, 16
          %s366 = scalar_lea.vmem [#allocation3], %s365
          %s367 = smul.u32 %s34, 8
          %s368 = ssub.s32 %s367, 1
          %p369 = scmp.gt.s32.totalorder %s368, 0
          %s370 = scalar_select %p369, %s368, 0
          %s372 = ssub.s32 256, 256
          %373 = vsyncadd %s363, %s372
          %s374 = smul.addr %s370, 2
          %s375 = smul.addr %s33, 32
          %s376 = sadd.s32 %s374, %s375
          %s377 = smul.addr %s376, 128
          %s378 = scalar_lea.hbm %s0, %s377
          %s379 = sshll.u32 %s366, 4
          %s380 = int_to_ptr.vmem [resolvable:$true] %s379
          %385 = dma.hbm_to_vmem [thread:$0]  %s378, 256, %s380, %s363, 128, 128, 8
        $region44: #{tpu_custom_call.1} parent=39 // pred_fallthru
          _
        // Predicated region
        $region45: #{tpu_custom_call.1} parent=39 // pred_check
          %p386 = pneg %p96
        $region46: #{tpu_custom_call.1} parent=39 // pred_check_branch
          %388 = sbr.rel (%p386) target = $region48
        $region47: #{tpu_custom_call.1} parent=39 // pred_region
          %s389 = sand.u32 %s26, 1
          %s390 = scalar_lea.sflag [#allocation7], %s389
          %s391 = sand.u32 %s86, 1
          %s392 = smul.addr %s391, 128
          %s393 = scalar_lea.vmem [#allocation6], %s392
          %s394 = smul.u32 8, %s34
          %s396 = ssub.s32 2048, 2048
          %397 = vsyncadd %s390, %s396
          %s398 = smul.addr %s394, 2
          %s399 = smul.addr %s33, 32
          %s400 = sadd.s32 %s398, %s399
          %s401 = smul.addr %s400, 128
          %s402 = scalar_lea.hbm %s1, %s401
          %s403 = sshll.u32 %s393, 4
          %s404 = int_to_ptr.vmem [resolvable:$true] %s403
          %409 = dma.hbm_to_vmem [thread:$0]  %s402, 2048, %s404, %s390, 128, 128, 8
        $region48: #{tpu_custom_call.1} parent=39 // pred_fallthru
          _
        // Predicated region
        $region49: #{tpu_custom_call.1} parent=39 // pred_check
          %p410 = pneg %p132
        $region50: #{tpu_custom_call.1} parent=39 // pred_check_branch
          %412 = sbr.rel (%p410) target = $region52
        $region51: #{tpu_custom_call.1} parent=39 // pred_region
          %s413 = sand.u32 %s26, 1
          %s414 = scalar_lea.sflag [#allocation7], %s413
          %s415 = sand.u32 %s122, 1
          %s416 = smul.addr %s415, 16
          %s417 = scalar_lea.vmem [#allocation8], %s416
          %s418 = smul.u32 %s34, 8
          %s419 = sadd.s32 %s418, 8
          %p420 = scmp.lt.s32.totalorder %s419, 15
          %s421 = scalar_select %p420, %s419, 15
          %s423 = ssub.s32 256, 256
          %424 = vsyncadd %s414, %s423
          %s425 = smul.addr %s421, 2
          %s426 = smul.addr %s33, 32
          %s427 = sadd.s32 %s425, %s426
          %s428 = smul.addr %s427, 128
          %s429 = scalar_lea.hbm %s2, %s428
          %s430 = sshll.u32 %s417, 4
          %s431 = int_to_ptr.vmem [resolvable:$true] %s430
          %436 = dma.hbm_to_vmem [thread:$0]  %s429, 256, %s431, %s414, 128, 128, 8
        $region52: #{tpu_custom_call.1} parent=39 // pred_fallthru
          _
      $region40: #{tpu_custom_call.1} parent=5 // pred_fallthru
        _
      %p437 = scmp.le.s32.totalorder 1, %s26
      %p438 = scmp.lt.s32.totalorder %s26, 5
      %p439 = pnand %p437, %p438
      %p440 = pneg %p439
      // Predicated region
      $region53: #{tpu_custom_call.1} parent=5 // pred_check
        _
      $region54: #{tpu_custom_call.1} parent=5 // pred_check_branch
        %442 = sbr.rel (%p439) target = $region56
      $region55: #{tpu_custom_call.1} parent=5 // pred_region
        %s443 = ssub.s32 %s26, 1
        %s444 = sand.u32 %s61, 1
        %s445 = scalar_lea.sflag [#allocation4], %s444
        %s446 = sand.u32 %s61, 1
        %s447 = smul.addr %s446, 16
        %s448 = scalar_lea.vmem [#allocation3], %s447
        // Predicated region
        $region57: #{tpu_custom_call.1} parent=55 // pred_check
          %p449 = pneg %p74
        $region58: #{tpu_custom_call.1} parent=55 // pred_check_branch
          %451 = sbr.rel (%p449) target = $region60
        $region59: #{tpu_custom_call.1} parent=55 // pred_region
          %452 = dma.done %s445, 256
        $region60: #{tpu_custom_call.1} parent=55 // pred_fallthru
          _
        %s453 = sand.u32 %s31, 1
        %s454 = scalar_lea.sflag [#allocation7], %s453
        %s455 = sand.u32 %s89, 1
        %s456 = smul.addr %s455, 128
        %s457 = scalar_lea.vmem [#allocation6], %s456
        // Predicated region
        $region61: #{tpu_custom_call.1} parent=55 // pred_check
          %p458 = pneg %p102
        $region62: #{tpu_custom_call.1} parent=55 // pred_check_branch
          %460 = sbr.rel (%p458) target = $region64
        $region63: #{tpu_custom_call.1} parent=55 // pred_region
          %461 = dma.done %s454, 2048
        $region64: #{tpu_custom_call.1} parent=55 // pred_fallthru
          _
        %s462 = sand.u32 %s31, 1
        %s463 = scalar_lea.sflag [#allocation7], %s462
        %s464 = sand.u32 %s125, 1
        %s465 = smul.addr %s464, 16
        %s466 = scalar_lea.vmem [#allocation8], %s465
        // Predicated region
        $region65: #{tpu_custom_call.1} parent=55 // pred_check
          %p467 = pneg %p138
        $region66: #{tpu_custom_call.1} parent=55 // pred_check_branch
          %469 = sbr.rel (%p467) target = $region68
        $region67: #{tpu_custom_call.1} parent=55 // pred_region
          %470 = dma.done %s463, 256
        $region68: #{tpu_custom_call.1} parent=55 // pred_fallthru
          _
        // Predicated region
        $region69: #{tpu_custom_call.1} parent=55 // pred_check
          %p471 = pneg %p159
        $region70: #{tpu_custom_call.1} parent=55 // pred_check_branch
          %473 = sbr.rel (%p471) target = $region72
        $region71: #{tpu_custom_call.1} parent=55 // pred_region
          %474 = dma.done [#allocation10], 1024
        $region72: #{tpu_custom_call.1} parent=55 // pred_fallthru
          _
        // Predicated region
        $region73: #{tpu_custom_call.1} parent=55 // pred_check
          %p475 = pneg %p180
        $region74: #{tpu_custom_call.1} parent=55 // pred_check_branch
          %477 = sbr.rel (%p475) target = $region76
        $region75: #{tpu_custom_call.1} parent=55 // pred_region
          %478 = dma.done [#allocation10], 9216
        $region76: #{tpu_custom_call.1} parent=55 // pred_fallthru
          _
        // Predicated region
        $region77: #{tpu_custom_call.1} parent=55 // pred_check
          %p479 = pneg %p201
        $region78: #{tpu_custom_call.1} parent=55 // pred_check_branch
          %481 = sbr.rel (%p479) target = $region80
        $region79: #{tpu_custom_call.1} parent=55 // pred_region
          %482 = dma.done [#allocation13], 1024
        $region80: #{tpu_custom_call.1} parent=55 // pred_fallthru
          _
        %s483 = sand.u32 %s61, 1
        %s484 = scalar_lea.sflag [#allocation4], %s483
        %s485 = sand.u32 %s61, 1
        %s486 = smul.addr %s485, 16
        %s487 = scalar_lea.vmem [#allocation3], %s486
        %p488 = pneg %p74
        %p489 = pneg %p71
        %s490 = sand.u32 %s31, 1
        %s491 = scalar_lea.sflag [#allocation7], %s490
        %s492 = sand.u32 %s89, 1
        %s493 = smul.addr %s492, 128
        %s494 = scalar_lea.vmem [#allocation6], %s493
        %p495 = pneg %p102
        %p496 = pneg %p99
        %s497 = sand.u32 %s31, 1
        %s498 = scalar_lea.sflag [#allocation7], %s497
        %s499 = sand.u32 %s125, 1
        %s500 = smul.addr %s499, 16
        %s501 = scalar_lea.vmem [#allocation8], %s500
        %p502 = pneg %p138
        %p503 = pneg %p135
        %p504 = pneg %p159
        %p505 = pneg %p156
        %p506 = pneg %p180
        %p507 = pneg %p177
        %p508 = pneg %p201
        %p509 = pneg %p198
        %p510 = pneg %p222
        %p511 = pneg %p219
        %p512 = pneg %p243
        %p513 = pneg %p240
        %p514 = pneg %p264
        %p515 = pneg %p261
        %p516 = pneg %p292
        %p517 = pneg %p289
        %s518 = sand.u32 %s279, 1
        %s519 = scalar_lea.sflag [#allocation5], %s518
        %s520 = sand.u32 %s279, 1
        %s521 = smul.addr %s520, 128
        %s522 = scalar_lea.vmem [#allocation14], %s521
        %s523 = smul.u32 %s36, 8
        %s524 = ssub.s32 %s523, 1
        %p525 = scmp.gt.s32.totalorder %s524, 0
        %s526 = scalar_select %p525, %s524, 0
        %s527 = smul.u32 8, %s36
        %s528 = smul.u32 %s36, 8
        %s529 = sadd.s32 %s528, 8
        %p530 = scmp.lt.s32.totalorder %s529, 15
        %s531 = scalar_select %p530, %s529, 15
        %s532 = smul.u32 8, %s36
        %v534 = vld [vmem:[%s448] sm:$0xff]
        %v535 = vld [vmem:[%s448 + $0x8] sm:$0xff]
        %v536 = vpack.c.bf16 %v535, %v534
        %v537 = vld [vmem:[%s457] sm:$0xff]
        %v538 = vld [vmem:[%s457 + $0x8] sm:$0xff]
        %v539 = vld [vmem:[%s457 + $0x10] sm:$0xff]
        %v540 = vld [vmem:[%s457 + $0x18] sm:$0xff]
        %v541 = vld [vmem:[%s457 + $0x20] sm:$0xff]
        %v542 = vld [vmem:[%s457 + $0x28] sm:$0xff]
        %v543 = vld [vmem:[%s457 + $0x30] sm:$0xff]
        %v544 = vld [vmem:[%s457 + $0x38] sm:$0xff]
        %v545 = vld [vmem:[%s457 + $0x40] sm:$0xff]
        %v546 = vld [vmem:[%s457 + $0x48] sm:$0xff]
        %v547 = vld [vmem:[%s457 + $0x50] sm:$0xff]
        %v548 = vld [vmem:[%s457 + $0x58] sm:$0xff]
        %v549 = vld [vmem:[%s457 + $0x60] sm:$0xff]
        %v550 = vld [vmem:[%s457 + $0x68] sm:$0xff]
        %v551 = vld [vmem:[%s457 + $0x70] sm:$0xff]
        %v552 = vld [vmem:[%s457 + $0x78] sm:$0xff]
        %v553 = vpack.c.bf16 %v538, %v537
        %v554 = vpack.c.bf16 %v540, %v539
        %v555 = vpack.c.bf16 %v542, %v541
        %v556 = vpack.c.bf16 %v544, %v543
        %v557 = vpack.c.bf16 %v546, %v545
        %v558 = vpack.c.bf16 %v548, %v547
        %v559 = vpack.c.bf16 %v550, %v549
        %v560 = vpack.c.bf16 %v552, %v551
        %v561 = vld [vmem:[%s466] sm:$0xff]
        %v562 = vld [vmem:[%s466 + $0x8] sm:$0xff]
        %v563 = vpack.c.bf16 %v562, %v561
        %v564 = vld [vmem:[#allocation9] sm:$0xf]
        %v565 = vld [vmem:[#allocation9 + $0x4] sm:$0xf]
        %v566 = vld [vmem:[#allocation9 + $0x8] sm:$0xf]
        %v567 = vld [vmem:[#allocation9 + $0xc] sm:$0xf]
        %v568 = vld [vmem:[#allocation9 + $0x10] sm:$0xf]
        %v569 = vld [vmem:[#allocation9 + $0x14] sm:$0xf]
        %v570 = vld [vmem:[#allocation9 + $0x18] sm:$0xf]
        %v571 = vld [vmem:[#allocation9 + $0x1c] sm:$0xf]
        %v572 = vld [vmem:[#allocation9 + $0x20] sm:$0xf]
        %v573 = vld [vmem:[#allocation9 + $0x24] sm:$0xf]
        %v574 = vld [vmem:[#allocation9 + $0x28] sm:$0xf]
        %v575 = vld [vmem:[#allocation9 + $0x2c] sm:$0xf]
        %v576 = vld [vmem:[#allocation9 + $0x30] sm:$0xf]
        %v577 = vld [vmem:[#allocation9 + $0x34] sm:$0xf]
        %v578 = vld [vmem:[#allocation9 + $0x38] sm:$0xf]
        %v579 = vld [vmem:[#allocation9 + $0x3c] sm:$0xf]
        %v580 = vld [vmem:[%s6] sm:$0x1]
        %v582 = vlaneseq
        %v583 = vshrl.u32 %v582, 7
        %v584 = vsub.s32 0, %v583
        %v585 = vrot.slane %v580, %v584
        %v603 = vunpack.c.l.b16 %v564
        %v604 = vunpack.c.l.b16 %v565
        %v605 = vunpack.c.l.b16 %v566
        %v606 = vunpack.c.l.b16 %v567
        %v607 = vunpack.c.l.b16 %v568
        %v608 = vunpack.c.l.b16 %v569
        %v609 = vunpack.c.l.b16 %v570
        %v610 = vunpack.c.l.b16 %v571
        %v611 = vunpack.c.l.b16 %v572
        %v612 = vunpack.c.l.b16 %v573
        %v613 = vunpack.c.l.b16 %v574
        %v614 = vunpack.c.l.b16 %v575
        %v615 = vunpack.c.l.b16 %v576
        %v616 = vunpack.c.l.b16 %v577
        %v617 = vunpack.c.l.b16 %v578
        %v618 = vunpack.c.l.b16 %v579
        %v619 = vpack.c.b16 %v604, %v603
        %v620 = vpack.c.b16 %v606, %v605
        %v621 = vpack.c.b16 %v608, %v607
        %v622 = vpack.c.b16 %v610, %v609
        %v623 = vpack.c.b16 %v612, %v611
        %v624 = vpack.c.b16 %v614, %v613
        %v625 = vpack.c.b16 %v616, %v615
        %v626 = vpack.c.b16 %v618, %v617
        %635 = vmatprep.subr.bf16.mxu0 0
        %636 = vmatpush1.bf16.msra.mxu0 %v619
        %637 = vmatprep.subr.bf16.mxu0 0
        %638 = vmatpush1.bf16.msra.mxu0 %v620
        %639 = vmatprep.subr.bf16.mxu0 0
        %640 = vmatpush1.bf16.msra.mxu0 %v621
        %641 = vmatprep.subr.bf16.mxu0 0
        %642 = vmatpush1.bf16.msra.mxu0 %v622
        %643 = vmatprep.subr.bf16.mxu0 0
        %644 = vmatpush1.bf16.msra.mxu0 %v623
        %645 = vmatprep.subr.bf16.mxu0 0
        %646 = vmatpush1.bf16.msra.mxu0 %v624
        %647 = vmatprep.subr.bf16.mxu0 0
        %648 = vmatpush1.bf16.msra.mxu0 %v625
        %649 = vmatprep.subr.bf16.mxu0 0
        %650 = vmatpush1.bf16.msra.mxu0 %v626
        %651 = vmatprep.subr.bf16.mxu0 0
        %652 = vmatpush1.bf16.msra.mxu0 0
        %653 = vmatprep.subr.bf16.mxu0 0
        %654 = vmatpush1.bf16.msra.mxu0 0
        %655 = vmatprep.subr.bf16.mxu0 0
        %656 = vmatpush1.bf16.msra.mxu0 0
        %657 = vmatprep.subr.bf16.mxu0 0
        %658 = vmatpush1.bf16.msra.mxu0 0
        %659 = vmatprep.subr.bf16.mxu0 0
        %660 = vmatpush1.bf16.msra.mxu0 0
        %661 = vmatprep.subr.bf16.mxu0 0
        %662 = vmatpush1.bf16.msra.mxu0 0
        %663 = vmatprep.subr.bf16.mxu0 0
        %664 = vmatpush1.bf16.msra.mxu0 0
        %665 = vmatprep.subr.bf16.mxu0 0
        %666 = vmatpush1.bf16.msra.mxu0 0
        %667 = vmatprep.mubr.bf16.mxu0 0
        %668 = vmatmul.mubr.bf16.gmra.mrb[0].mxu0 %v536
        %v669 = vpop.f32.mrb[0].mxu0
        %v670 = vadd.f32 %v585, %v669
        %v671 = vpop.f32.mrb[0].mxu0
        %v672 = vpop.f32.mrb[0].mxu0
        %v673 = vadd.f32 %v585, %v672
        %v674 = vpop.f32.mrb[0].mxu0
        %675 = vmatprep.mubr.bf16.mxu0 0
        %676 = vmatmul.mubr.bf16.gmra.mrb[0].mxu0 %v553
        %v677 = vpop.f32.mrb[0].mxu0
        %v678 = vadd.f32 %v585, %v677
        %v679 = vpop.f32.mrb[0].mxu0
        %v680 = vpop.f32.mrb[0].mxu0
        %v681 = vadd.f32 %v585, %v680
        %v682 = vpop.f32.mrb[0].mxu0
        %683 = vmatprep.mubr.bf16.mxu0 0
        %684 = vmatmul.mubr.bf16.gmra.mrb[0].mxu0 %v554
        %v685 = vpop.f32.mrb[0].mxu0
        %v686 = vadd.f32 %v585, %v685
        %v687 = vpop.f32.mrb[0].mxu0
        %v688 = vpop.f32.mrb[0].mxu0
        %v689 = vadd.f32 %v585, %v688
        %v690 = vpop.f32.mrb[0].mxu0
        %691 = vmatprep.mubr.bf16.mxu0 0
        %692 = vmatmul.mubr.bf16.gmra.mrb[0].mxu0 %v555
        %v693 = vpop.f32.mrb[0].mxu0
        %v694 = vadd.f32 %v585, %v693
        %v695 = vpop.f32.mrb[0].mxu0
        %v696 = vpop.f32.mrb[0].mxu0
        %v697 = vadd.f32 %v585, %v696
        %v698 = vpop.f32.mrb[0].mxu0
        %699 = vmatprep.mubr.bf16.mxu0 0
        %700 = vmatmul.mubr.bf16.gmra.mrb[0].mxu0 %v556
        %v701 = vpop.f32.mrb[0].mxu0
        %v702 = vadd.f32 %v585, %v701
        %v703 = vpop.f32.mrb[0].mxu0
        %v704 = vpop.f32.mrb[0].mxu0
        %v705 = vadd.f32 %v585, %v704
        %v706 = vpop.f32.mrb[0].mxu0
        %707 = vmatprep.mubr.bf16.mxu0 0
        %708 = vmatmul.mubr.bf16.gmra.mrb[0].mxu0 %v557
        %v709 = vpop.f32.mrb[0].mxu0
        %v710 = vadd.f32 %v585, %v709
        %v711 = vpop.f32.mrb[0].mxu0
        %v712 = vpop.f32.mrb[0].mxu0
        %v713 = vadd.f32 %v585, %v712
        %v714 = vpop.f32.mrb[0].mxu0
        %715 = vmatprep.mubr.bf16.mxu0 0
        %716 = vmatmul.mubr.bf16.gmra.mrb[0].mxu0 %v558
        %v717 = vpop.f32.mrb[0].mxu0
        %v718 = vadd.f32 %v585, %v717
        %v719 = vpop.f32.mrb[0].mxu0
        %v720 = vpop.f32.mrb[0].mxu0
        %v721 = vadd.f32 %v585, %v720
        %v722 = vpop.f32.mrb[0].mxu0
        %723 = vmatprep.mubr.bf16.mxu0 0
        %724 = vmatmul.mubr.bf16.gmra.mrb[0].mxu0 %v559
        %v725 = vpop.f32.mrb[0].mxu0
        %v726 = vadd.f32 %v585, %v725
        %v727 = vpop.f32.mrb[0].mxu0
        %v728 = vpop.f32.mrb[0].mxu0
        %v729 = vadd.f32 %v585, %v728
        %v730 = vpop.f32.mrb[0].mxu0
        %731 = vmatprep.mubr.bf16.mxu0 0
        %732 = vmatmul.mubr.bf16.gmra.mrb[0].mxu0 %v560
        %v733 = vpop.f32.mrb[0].mxu0
        %v734 = vadd.f32 %v585, %v733
        %v735 = vpop.f32.mrb[0].mxu0
        %v736 = vpop.f32.mrb[0].mxu0
        %v737 = vadd.f32 %v585, %v736
        %v738 = vpop.f32.mrb[0].mxu0
        %739 = vmatprep.mubr.bf16.mxu0 0
        %740 = vmatmul.mubr.bf16.gmra.mrb[0].mxu0 %v563
        %v741 = vpop.f32.mrb[0].mxu0
        %v742 = vadd.f32 %v585, %v741
        %v743 = vpop.f32.mrb[0].mxu0
        %v744 = vpop.f32.mrb[0].mxu0
        %v745 = vadd.f32 %v585, %v744
        %v746 = vpop.f32.mrb[0].mxu0
        %747 = vdwg.mxu0
        %v748 = vmax.f32 %v670, 0.0
        %v749 = vmax.f32 %v673, 0.0
        %v750 = vmax.f32 %v678, 0.0
        %v751 = vmax.f32 %v681, 0.0
        %v752 = vmax.f32 %v686, 0.0
        %v753 = vmax.f32 %v689, 0.0
        %v754 = vmax.f32 %v694, 0.0
        %v755 = vmax.f32 %v697, 0.0
        %v756 = vmax.f32 %v702, 0.0
        %v757 = vmax.f32 %v705, 0.0
        %v758 = vmax.f32 %v710, 0.0
        %v759 = vmax.f32 %v713, 0.0
        %v760 = vmax.f32 %v718, 0.0
        %v761 = vmax.f32 %v721, 0.0
        %v762 = vmax.f32 %v726, 0.0
        %v763 = vmax.f32 %v729, 0.0
        %v764 = vmax.f32 %v734, 0.0
        %v765 = vmax.f32 %v737, 0.0
        %v766 = vmax.f32 %v742, 0.0
        %v767 = vmax.f32 %v745, 0.0
        %v768 = vpack.c.bf16 %v749, %v748
        %v769 = vpack.c.bf16 %v751, %v750
        %v770 = vpack.c.bf16 %v753, %v752
        %v771 = vpack.c.bf16 %v755, %v754
        %v772 = vpack.c.bf16 %v757, %v756
        %v773 = vpack.c.bf16 %v759, %v758
        %v774 = vpack.c.bf16 %v761, %v760
        %v775 = vpack.c.bf16 %v763, %v762
        %v776 = vpack.c.bf16 %v765, %v764
        %v777 = vpack.c.bf16 %v767, %v766
        %778 = vst [vmem:[#allocation2] sm:$0xff] %v768
        %779 = vst [vmem:[#allocation2 + $0x8] sm:$0xff] %v769
        %780 = vst [vmem:[#allocation2 + $0x10] sm:$0xff] %v770
        %781 = vst [vmem:[#allocation2 + $0x18] sm:$0xff] %v771
        %782 = vst [vmem:[#allocation2 + $0x20] sm:$0xff] %v772
        %783 = vst [vmem:[#allocation2 + $0x28] sm:$0xff] %v773
        %784 = vst [vmem:[#allocation2 + $0x30] sm:$0xff] %v774
        %785 = vst [vmem:[#allocation2 + $0x38] sm:$0xff] %v775
        %786 = vst [vmem:[#allocation2 + $0x40] sm:$0xff] %v776
        %787 = vst [vmem:[#allocation2 + $0x48] sm:$0xff] %v777
        %p788 = scmp.eq.s32.totalorder %s36, 0
        // Predicated region
        $region81: #{tpu_custom_call.1} parent=55 // pred_check
          %p789 = pneg %p788
        $region82: #{tpu_custom_call.1} parent=55 // pred_check_branch
          %791 = sbr.rel (%p789) target = $region84
        $region83: #{tpu_custom_call.1} parent=55 // pred_region
          %792 = vst [vmem:[#allocation2] sm:$0xff] 0
        $region84: #{tpu_custom_call.1} parent=55 // pred_fallthru
          _
        %p793 = scmp.eq.s32.totalorder %s36, 1
        // Predicated region
        $region85: #{tpu_custom_call.1} parent=55 // pred_check
          %p794 = pneg %p793
        $region86: #{tpu_custom_call.1} parent=55 // pred_check_branch
          %796 = sbr.rel (%p794) target = $region88
        $region87: #{tpu_custom_call.1} parent=55 // pred_region
          %s797 = scalar_lea.vmem [#allocation2], 72
          %798 = vst [vmem:[%s797] sm:$0xff] 0
        $region88: #{tpu_custom_call.1} parent=55 // pred_fallthru
          _
        %v799 = vld [vmem:[#allocation2] sm:$0xff]
        %v800 = vld [vmem:[#allocation2 + $0x8] sm:$0xff]
        %v801 = vld [vmem:[#allocation2 + $0x10] sm:$0xff]
        %v802 = vld [vmem:[#allocation2 + $0x18] sm:$0xff]
        %v803 = vld [vmem:[#allocation2 + $0x20] sm:$0xff]
        %v804 = vld [vmem:[#allocation2 + $0x28] sm:$0xff]
        %v805 = vld [vmem:[#allocation2 + $0x30] sm:$0xff]
        %v806 = vld [vmem:[#allocation2 + $0x38] sm:$0xff]
        %s807 = scalar_lea.vmem [#allocation2], 8
        %v808 = vld [vmem:[%s807] sm:$0xff]
        %v809 = vld [vmem:[%s807 + $0x8] sm:$0xff]
        %v810 = vld [vmem:[%s807 + $0x10] sm:$0xff]
        %v811 = vld [vmem:[%s807 + $0x18] sm:$0xff]
        %v812 = vld [vmem:[%s807 + $0x20] sm:$0xff]
        %v813 = vld [vmem:[%s807 + $0x28] sm:$0xff]
        %v814 = vld [vmem:[%s807 + $0x30] sm:$0xff]
        %v815 = vld [vmem:[%s807 + $0x38] sm:$0xff]
        %s816 = scalar_lea.vmem [#allocation2], 16
        %v817 = vld [vmem:[%s816] sm:$0xff]
        %v818 = vld [vmem:[%s816 + $0x8] sm:$0xff]
        %v819 = vld [vmem:[%s816 + $0x10] sm:$0xff]
        %v820 = vld [vmem:[%s816 + $0x18] sm:$0xff]
        %v821 = vld [vmem:[%s816 + $0x20] sm:$0xff]
        %v822 = vld [vmem:[%s816 + $0x28] sm:$0xff]
        %v823 = vld [vmem:[%s816 + $0x30] sm:$0xff]
        %v824 = vld [vmem:[%s816 + $0x38] sm:$0xff]
        %v825 = vld [vmem:[#allocation11] sm:$0xf]
        %v826 = vld [vmem:[#allocation11 + $0x4] sm:$0xf]
        %v827 = vld [vmem:[#allocation11 + $0x8] sm:$0xf]
        %v828 = vld [vmem:[#allocation11 + $0xc] sm:$0xf]
        %v829 = vld [vmem:[#allocation11 + $0x10] sm:$0xf]
        %v830 = vld [vmem:[#allocation11 + $0x14] sm:$0xf]
        %v831 = vld [vmem:[#allocation11 + $0x18] sm:$0xf]
        %v832 = vld [vmem:[#allocation11 + $0x1c] sm:$0xf]
        %v833 = vld [vmem:[#allocation11 + $0x20] sm:$0xf]
        %v834 = vld [vmem:[#allocation11 + $0x24] sm:$0xf]
        %v835 = vld [vmem:[#allocation11 + $0x28] sm:$0xf]
        %v836 = vld [vmem:[#allocation11 + $0x2c] sm:$0xf]
        %v837 = vld [vmem:[#allocation11 + $0x30] sm:$0xf]
        %v838 = vld [vmem:[#allocation11 + $0x34] sm:$0xf]
        %v839 = vld [vmem:[#allocation11 + $0x38] sm:$0xf]
        %v840 = vld [vmem:[#allocation11 + $0x3c] sm:$0xf]
        %v841 = vld [vmem:[#allocation11 + $0x40] sm:$0xf]
        %v842 = vld [vmem:[#allocation11 + $0x44] sm:$0xf]
        %v843 = vld [vmem:[#allocation11 + $0x48] sm:$0xf]
        %v844 = vld [vmem:[#allocation11 + $0x4c] sm:$0xf]
        %v845 = vld [vmem:[#allocation11 + $0x50] sm:$0xf]
        %v846 = vld [vmem:[#allocation11 + $0x54] sm:$0xf]
        %v847 = vld [vmem:[#allocation11 + $0x58] sm:$0xf]
        %v848 = vld [vmem:[#allocation11 + $0x5c] sm:$0xf]
        %v849 = vld [vmem:[#allocation11 + $0x60] sm:$0xf]
        %v850 = vld [vmem:[#allocation11 + $0x64] sm:$0xf]
        %v851 = vld [vmem:[#allocation11 + $0x68] sm:$0xf]
        %v852 = vld [vmem:[#allocation11 + $0x6c] sm:$0xf]
        %v853 = vld [vmem:[#allocation11 + $0x70] sm:$0xf]
        %v854 = vld [vmem:[#allocation11 + $0x74] sm:$0xf]
        %v855 = vld [vmem:[#allocation11 + $0x78] sm:$0xf]
        %v856 = vld [vmem:[#allocation11 + $0x7c] sm:$0xf]
        %v857 = vld [vmem:[#allocation11 + $0x80] sm:$0xf]
        %v858 = vld [vmem:[#allocation11 + $0x84] sm:$0xf]
        %v859 = vld [vmem:[#allocation11 + $0x88] sm:$0xf]
        %v860 = vld [vmem:[#allocation11 + $0x8c] sm:$0xf]
        %v861 = vld [vmem:[#allocation11 + $0x90] sm:$0xf]
        %v862 = vld [vmem:[#allocation11 + $0x94] sm:$0xf]
        %v863 = vld [vmem:[#allocation11 + $0x98] sm:$0xf]
        %v864 = vld [vmem:[#allocation11 + $0x9c] sm:$0xf]
        %v865 = vld [vmem:[#allocation11 + $0xa0] sm:$0xf]
        %v866 = vld [vmem:[#allocation11 + $0xa4] sm:$0xf]
        %v867 = vld [vmem:[#allocation11 + $0xa8] sm:$0xf]
        %v868 = vld [vmem:[#allocation11 + $0xac] sm:$0xf]
        %v869 = vld [vmem:[#allocation11 + $0xb0] sm:$0xf]
        %v870 = vld [vmem:[#allocation11 + $0xb4] sm:$0xf]
        %v871 = vld [vmem:[#allocation11 + $0xb8] sm:$0xf]
        %v872 = vld [vmem:[#allocation11 + $0xbc] sm:$0xf]
        %v921 = vunpack.c.l.b16 %v825
        %v922 = vunpack.c.l.b16 %v826
        %v923 = vunpack.c.l.b16 %v827
        %v924 = vunpack.c.l.b16 %v828
        %v925 = vunpack.c.l.b16 %v829
        %v926 = vunpack.c.l.b16 %v830
        %v927 = vunpack.c.l.b16 %v831
        %v928 = vunpack.c.l.b16 %v832
        %v929 = vunpack.c.l.b16 %v833
        %v930 = vunpack.c.l.b16 %v834
        %v931 = vunpack.c.l.b16 %v835
        %v932 = vunpack.c.l.b16 %v836
        %v933 = vunpack.c.l.b16 %v837
        %v934 = vunpack.c.l.b16 %v838
        %v935 = vunpack.c.l.b16 %v839
        %v936 = vunpack.c.l.b16 %v840
        %v937 = vunpack.c.l.b16 %v841
        %v938 = vunpack.c.l.b16 %v842
        %v939 = vunpack.c.l.b16 %v843
        %v940 = vunpack.c.l.b16 %v844
        %v941 = vunpack.c.l.b16 %v845
        %v942 = vunpack.c.l.b16 %v846
        %v943 = vunpack.c.l.b16 %v847
        %v944 = vunpack.c.l.b16 %v848
        %v945 = vunpack.c.l.b16 %v849
        %v946 = vunpack.c.l.b16 %v850
        %v947 = vunpack.c.l.b16 %v851
        %v948 = vunpack.c.l.b16 %v852
        %v949 = vunpack.c.l.b16 %v853
        %v950 = vunpack.c.l.b16 %v854
        %v951 = vunpack.c.l.b16 %v855
        %v952 = vunpack.c.l.b16 %v856
        %v953 = vunpack.c.l.b16 %v857
        %v954 = vunpack.c.l.b16 %v858
        %v955 = vunpack.c.l.b16 %v859
        %v956 = vunpack.c.l.b16 %v860
        %v957 = vunpack.c.l.b16 %v861
        %v958 = vunpack.c.l.b16 %v862
        %v959 = vunpack.c.l.b16 %v863
        %v960 = vunpack.c.l.b16 %v864
        %v961 = vunpack.c.l.b16 %v865
        %v962 = vunpack.c.l.b16 %v866
        %v963 = vunpack.c.l.b16 %v867
        %v964 = vunpack.c.l.b16 %v868
        %v965 = vunpack.c.l.b16 %v869
        %v966 = vunpack.c.l.b16 %v870
        %v967 = vunpack.c.l.b16 %v871
        %v968 = vunpack.c.l.b16 %v872
        %v969 = vpack.c.b16 %v922, %v921
        %v970 = vpack.c.b16 %v924, %v923
        %v971 = vpack.c.b16 %v926, %v925
        %v972 = vpack.c.b16 %v928, %v927
        %v973 = vpack.c.b16 %v930, %v929
        %v974 = vpack.c.b16 %v932, %v931
        %v975 = vpack.c.b16 %v934, %v933
        %v976 = vpack.c.b16 %v936, %v935
        %v977 = vpack.c.b16 %v938, %v937
        %v978 = vpack.c.b16 %v940, %v939
        %v979 = vpack.c.b16 %v942, %v941
        %v980 = vpack.c.b16 %v944, %v943
        %v981 = vpack.c.b16 %v946, %v945
        %v982 = vpack.c.b16 %v948, %v947
        %v983 = vpack.c.b16 %v950, %v949
        %v984 = vpack.c.b16 %v952, %v951
        %v985 = vpack.c.b16 %v954, %v953
        %v986 = vpack.c.b16 %v956, %v955
        %v987 = vpack.c.b16 %v958, %v957
        %v988 = vpack.c.b16 %v960, %v959
        %v989 = vpack.c.b16 %v962, %v961
        %v990 = vpack.c.b16 %v964, %v963
        %v991 = vpack.c.b16 %v966, %v965
        %v992 = vpack.c.b16 %v968, %v967
        %1017 = vmatprep.subr.bf16.mxu0 0
        %1018 = vmatpush1.bf16.msra.mxu0 %v969
        %1019 = vmatprep.subr.bf16.mxu0 0
        %1020 = vmatpush1.bf16.msra.mxu0 %v970
        %1021 = vmatprep.subr.bf16.mxu0 0
        %1022 = vmatpush1.bf16.msra.mxu0 %v971
        %1023 = vmatprep.subr.bf16.mxu0 0
        %1024 = vmatpush1.bf16.msra.mxu0 %v972
        %1025 = vmatprep.subr.bf16.mxu0 0
        %1026 = vmatpush1.bf16.msra.mxu0 %v973
        %1027 = vmatprep.subr.bf16.mxu0 0
        %1028 = vmatpush1.bf16.msra.mxu0 %v974
        %1029 = vmatprep.subr.bf16.mxu0 0
        %1030 = vmatpush1.bf16.msra.mxu0 %v975
        %1031 = vmatprep.subr.bf16.mxu0 0
        %1032 = vmatpush1.bf16.msra.mxu0 %v976
        %1033 = vmatprep.subr.bf16.mxu0 0
        %1034 = vmatpush1.bf16.msra.mxu0 %v977
        %1035 = vmatprep.subr.bf16.mxu0 0
        %1036 = vmatpush1.bf16.msra.mxu0 %v978
        %1037 = vmatprep.subr.bf16.mxu0 0
        %1038 = vmatpush1.bf16.msra.mxu0 %v979
        %1039 = vmatprep.subr.bf16.mxu0 0
        %1040 = vmatpush1.bf16.msra.mxu0 %v980
        %1041 = vmatprep.subr.bf16.mxu0 0
        %1042 = vmatpush1.bf16.msra.mxu0 %v981
        %1043 = vmatprep.subr.bf16.mxu0 0
        %1044 = vmatpush1.bf16.msra.mxu0 %v982
        %1045 = vmatprep.subr.bf16.mxu0 0
        %1046 = vmatpush1.bf16.msra.mxu0 %v983
        %1047 = vmatprep.subr.bf16.mxu0 0
        %1048 = vmatpush1.bf16.msra.mxu0 %v984
        %1049 = vmatprep.mubr.bf16.mxu0 %v808
        %1050 = vmatmul.mubr.bf16.gmra.mrb[0].mxu0 %v799
        %v1051 = vpop.f32.mrb[0].mxu0
        %v1052 = vadd.f32 0.0, %v1051
        %v1053 = vpop.f32.mrb[0].mxu0
        %v1054 = vpop.f32.mrb[0].mxu0
        %v1055 = vadd.f32 0.0, %v1054
        %v1056 = vpop.f32.mrb[0].mxu0
        %1057 = vmatprep.mubr.bf16.mxu0 %v809
        %1058 = vmatmul.mubr.bf16.gmra.mrb[0].mxu0 %v800
        %v1059 = vpop.f32.mrb[0].mxu0
        %v1060 = vadd.f32 0.0, %v1059
        %v1061 = vpop.f32.mrb[0].mxu0
        %v1062 = vpop.f32.mrb[0].mxu0
        %v1063 = vadd.f32 0.0, %v1062
        %v1064 = vpop.f32.mrb[0].mxu0
        %1065 = vmatprep.mubr.bf16.mxu0 %v810
        %1066 = vmatmul.mubr.bf16.gmra.mrb[0].mxu0 %v801
        %v1067 = vpop.f32.mrb[0].mxu0
        %v1068 = vadd.f32 0.0, %v1067
        %v1069 = vpop.f32.mrb[0].mxu0
        %v1070 = vpop.f32.mrb[0].mxu0
        %v1071 = vadd.f32 0.0, %v1070
        %v1072 = vpop.f32.mrb[0].mxu0
        %1073 = vmatprep.mubr.bf16.mxu0 %v811
        %1074 = vmatmul.mubr.bf16.gmra.mrb[0].mxu0 %v802
        %v1075 = vpop.f32.mrb[0].mxu0
        %v1076 = vadd.f32 0.0, %v1075
        %v1077 = vpop.f32.mrb[0].mxu0
        %v1078 = vpop.f32.mrb[0].mxu0
        %v1079 = vadd.f32 0.0, %v1078
        %v1080 = vpop.f32.mrb[0].mxu0
        %1081 = vmatprep.mubr.bf16.mxu0 %v812
        %1082 = vmatmul.mubr.bf16.gmra.mrb[0].mxu0 %v803
        %v1083 = vpop.f32.mrb[0].mxu0
        %v1084 = vadd.f32 0.0, %v1083
        %v1085 = vpop.f32.mrb[0].mxu0
        %v1086 = vpop.f32.mrb[0].mxu0
        %v1087 = vadd.f32 0.0, %v1086
        %v1088 = vpop.f32.mrb[0].mxu0
        %1089 = vmatprep.mubr.bf16.mxu0 %v813
        %1090 = vmatmul.mubr.bf16.gmra.mrb[0].mxu0 %v804
        %v1091 = vpop.f32.mrb[0].mxu0
        %v1092 = vadd.f32 0.0, %v1091
        %v1093 = vpop.f32.mrb[0].mxu0
        %v1094 = vpop.f32.mrb[0].mxu0
        %v1095 = vadd.f32 0.0, %v1094
        %v1096 = vpop.f32.mrb[0].mxu0
        %1097 = vmatprep.mubr.bf16.mxu0 %v814
        %1098 = vmatmul.mubr.bf16.gmra.mrb[0].mxu0 %v805
        %v1099 = vpop.f32.mrb[0].mxu0
        %v1100 = vadd.f32 0.0, %v1099
        %v1101 = vpop.f32.mrb[0].mxu0
        %v1102 = vpop.f32.mrb[0].mxu0
        %v1103 = vadd.f32 0.0, %v1102
        %v1104 = vpop.f32.mrb[0].mxu0
        %1105 = vmatprep.mubr.bf16.mxu0 %v815
        %1106 = vmatmul.mubr.bf16.gmra.mrb[0].mxu0 %v806
        %v1107 = vpop.f32.mrb[0].mxu0
        %v1108 = vadd.f32 0.0, %v1107
        %v1109 = vpop.f32.mrb[0].mxu0
        %v1110 = vpop.f32.mrb[0].mxu0
        %v1111 = vadd.f32 0.0, %v1110
        %v1112 = vpop.f32.mrb[0].mxu0
        %1113 = vdwg.mxu0
        %1114 = vmatprep.subr.bf16.mxu0 0
        %1115 = vmatpush1.bf16.msra.mxu0 %v985
        %1116 = vmatprep.subr.bf16.mxu0 0
        %1117 = vmatpush1.bf16.msra.mxu0 %v986
        %1118 = vmatprep.subr.bf16.mxu0 0
        %1119 = vmatpush1.bf16.msra.mxu0 %v987
        %1120 = vmatprep.subr.bf16.mxu0 0
        %1121 = vmatpush1.bf16.msra.mxu0 %v988
        %1122 = vmatprep.subr.bf16.mxu0 0
        %1123 = vmatpush1.bf16.msra.mxu0 %v989
        %1124 = vmatprep.subr.bf16.mxu0 0
        %1125 = vmatpush1.bf16.msra.mxu0 %v990
        %1126 = vmatprep.subr.bf16.mxu0 0
        %1127 = vmatpush1.bf16.msra.mxu0 %v991
        %1128 = vmatprep.subr.bf16.mxu0 0
        %1129 = vmatpush1.bf16.msra.mxu0 %v992
        %1130 = vmatprep.subr.bf16.mxu0 0
        %1131 = vmatpush1.bf16.msra.mxu0 0
        %1132 = vmatprep.subr.bf16.mxu0 0
        %1133 = vmatpush1.bf16.msra.mxu0 0
        %1134 = vmatprep.subr.bf16.mxu0 0
        %1135 = vmatpush1.bf16.msra.mxu0 0
        %1136 = vmatprep.subr.bf16.mxu0 0
        %1137 = vmatpush1.bf16.msra.mxu0 0
        %1138 = vmatprep.subr.bf16.mxu0 0
        %1139 = vmatpush1.bf16.msra.mxu0 0
        %1140 = vmatprep.subr.bf16.mxu0 0
        %1141 = vmatpush1.bf16.msra.mxu0 0
        %1142 = vmatprep.subr.bf16.mxu0 0
        %1143 = vmatpush1.bf16.msra.mxu0 0
        %1144 = vmatprep.subr.bf16.mxu0 0
        %1145 = vmatpush1.bf16.msra.mxu0 0
        %1146 = vmatprep.mubr.bf16.mxu0 0
        %1147 = vmatmul.mubr.bf16.gmra.mrb[0].mxu0 %v817
        %v1148 = vpop.f32.mrb[0].mxu0
        %v1149 = vadd.f32 %v1052, %v1148
        %v1150 = vpop.f32.mrb[0].mxu0
        %v1151 = vpop.f32.mrb[0].mxu0
        %v1152 = vadd.f32 %v1055, %v1151
        %v1153 = vpop.f32.mrb[0].mxu0
        %1154 = vmatprep.mubr.bf16.mxu0 0
        %1155 = vmatmul.mubr.bf16.gmra.mrb[0].mxu0 %v818
        %v1156 = vpop.f32.mrb[0].mxu0
        %v1157 = vadd.f32 %v1060, %v1156
        %v1158 = vpop.f32.mrb[0].mxu0
        %v1159 = vpop.f32.mrb[0].mxu0
        %v1160 = vadd.f32 %v1063, %v1159
        %v1161 = vpop.f32.mrb[0].mxu0
        %1162 = vmatprep.mubr.bf16.mxu0 0
        %1163 = vmatmul.mubr.bf16.gmra.mrb[0].mxu0 %v819
        %v1164 = vpop.f32.mrb[0].mxu0
        %v1165 = vadd.f32 %v1068, %v1164
        %v1166 = vpop.f32.mrb[0].mxu0
        %v1167 = vpop.f32.mrb[0].mxu0
        %v1168 = vadd.f32 %v1071, %v1167
        %v1169 = vpop.f32.mrb[0].mxu0
        %1170 = vmatprep.mubr.bf16.mxu0 0
        %1171 = vmatmul.mubr.bf16.gmra.mrb[0].mxu0 %v820
        %v1172 = vpop.f32.mrb[0].mxu0
        %v1173 = vadd.f32 %v1076, %v1172
        %v1174 = vpop.f32.mrb[0].mxu0
        %v1175 = vpop.f32.mrb[0].mxu0
        %v1176 = vadd.f32 %v1079, %v1175
        %v1177 = vpop.f32.mrb[0].mxu0
        %1178 = vmatprep.mubr.bf16.mxu0 0
        %1179 = vmatmul.mubr.bf16.gmra.mrb[0].mxu0 %v821
        %v1180 = vpop.f32.mrb[0].mxu0
        %v1181 = vadd.f32 %v1084, %v1180
        %v1182 = vpop.f32.mrb[0].mxu0
        %v1183 = vpop.f32.mrb[0].mxu0
        %v1184 = vadd.f32 %v1087, %v1183
        %v1185 = vpop.f32.mrb[0].mxu0
        %1186 = vmatprep.mubr.bf16.mxu0 0
        %1187 = vmatmul.mubr.bf16.gmra.mrb[0].mxu0 %v822
        %v1188 = vpop.f32.mrb[0].mxu0
        %v1189 = vadd.f32 %v1092, %v1188
        %v1190 = vpop.f32.mrb[0].mxu0
        %v1191 = vpop.f32.mrb[0].mxu0
        %v1192 = vadd.f32 %v1095, %v1191
        %v1193 = vpop.f32.mrb[0].mxu0
        %1194 = vmatprep.mubr.bf16.mxu0 0
        %1195 = vmatmul.mubr.bf16.gmra.mrb[0].mxu0 %v823
        %v1196 = vpop.f32.mrb[0].mxu0
        %v1197 = vadd.f32 %v1100, %v1196
        %v1198 = vpop.f32.mrb[0].mxu0
        %v1199 = vpop.f32.mrb[0].mxu0
        %v1200 = vadd.f32 %v1103, %v1199
        %v1201 = vpop.f32.mrb[0].mxu0
        %1202 = vmatprep.mubr.bf16.mxu0 0
        %1203 = vmatmul.mubr.bf16.gmra.mrb[0].mxu0 %v824
        %v1204 = vpop.f32.mrb[0].mxu0
        %v1205 = vadd.f32 %v1108, %v1204
        %v1206 = vpop.f32.mrb[0].mxu0
        %v1207 = vpop.f32.mrb[0].mxu0
        %v1208 = vadd.f32 %v1111, %v1207
        %v1209 = vpop.f32.mrb[0].mxu0
        %1210 = vdwg.mxu0
        %s1211 = scalar_lea.vmem [#allocation11], 192
        %v1212 = vld [vmem:[%s1211] sm:$0xf]
        %v1213 = vld [vmem:[%s1211 + $0x4] sm:$0xf]
        %v1214 = vld [vmem:[%s1211 + $0x8] sm:$0xf]
        %v1215 = vld [vmem:[%s1211 + $0xc] sm:$0xf]
        %v1216 = vld [vmem:[%s1211 + $0x10] sm:$0xf]
        %v1217 = vld [vmem:[%s1211 + $0x14] sm:$0xf]
        %v1218 = vld [vmem:[%s1211 + $0x18] sm:$0xf]
        %v1219 = vld [vmem:[%s1211 + $0x1c] sm:$0xf]
        %v1220 = vld [vmem:[%s1211 + $0x20] sm:$0xf]
        %v1221 = vld [vmem:[%s1211 + $0x24] sm:$0xf]
        %v1222 = vld [vmem:[%s1211 + $0x28] sm:$0xf]
        %v1223 = vld [vmem:[%s1211 + $0x2c] sm:$0xf]
        %v1224 = vld [vmem:[%s1211 + $0x30] sm:$0xf]
        %v1225 = vld [vmem:[%s1211 + $0x34] sm:$0xf]
        %v1226 = vld [vmem:[%s1211 + $0x38] sm:$0xf]
        %v1227 = vld [vmem:[%s1211 + $0x3c] sm:$0xf]
        %v1228 = vld [vmem:[%s1211 + $0x40] sm:$0xf]
        %v1229 = vld [vmem:[%s1211 + $0x44] sm:$0xf]
        %v1230 = vld [vmem:[%s1211 + $0x48] sm:$0xf]
        %v1231 = vld [vmem:[%s1211 + $0x4c] sm:$0xf]
        %v1232 = vld [vmem:[%s1211 + $0x50] sm:$0xf]
        %v1233 = vld [vmem:[%s1211 + $0x54] sm:$0xf]
        %v1234 = vld [vmem:[%s1211 + $0x58] sm:$0xf]
        %v1235 = vld [vmem:[%s1211 + $0x5c] sm:$0xf]
        %v1236 = vld [vmem:[%s1211 + $0x60] sm:$0xf]
        %v1237 = vld [vmem:[%s1211 + $0x64] sm:$0xf]
        %v1238 = vld [vmem:[%s1211 + $0x68] sm:$0xf]
        %v1239 = vld [vmem:[%s1211 + $0x6c] sm:$0xf]
        %v1240 = vld [vmem:[%s1211 + $0x70] sm:$0xf]
        %v1241 = vld [vmem:[%s1211 + $0x74] sm:$0xf]
        %v1242 = vld [vmem:[%s1211 + $0x78] sm:$0xf]
        %v1243 = vld [vmem:[%s1211 + $0x7c] sm:$0xf]
        %v1244 = vld [vmem:[%s1211 + $0x80] sm:$0xf]
        %v1245 = vld [vmem:[%s1211 + $0x84] sm:$0xf]
        %v1246 = vld [vmem:[%s1211 + $0x88] sm:$0xf]
        %v1247 = vld [vmem:[%s1211 + $0x8c] sm:$0xf]
        %v1248 = vld [vmem:[%s1211 + $0x90] sm:$0xf]
        %v1249 = vld [vmem:[%s1211 + $0x94] sm:$0xf]
        %v1250 = vld [vmem:[%s1211 + $0x98] sm:$0xf]
        %v1251 = vld [vmem:[%s1211 + $0x9c] sm:$0xf]
        %v1252 = vld [vmem:[%s1211 + $0xa0] sm:$0xf]
        %v1253 = vld [vmem:[%s1211 + $0xa4] sm:$0xf]
        %v1254 = vld [vmem:[%s1211 + $0xa8] sm:$0xf]
        %v1255 = vld [vmem:[%s1211 + $0xac] sm:$0xf]
        %v1256 = vld [vmem:[%s1211 + $0xb0] sm:$0xf]
        %v1257 = vld [vmem:[%s1211 + $0xb4] sm:$0xf]
        %v1258 = vld [vmem:[%s1211 + $0xb8] sm:$0xf]
        %v1259 = vld [vmem:[%s1211 + $0xbc] sm:$0xf]
        %s1260 = scalar_lea.vmem [#allocation11], 384
        %v1261 = vld [vmem:[%s1260] sm:$0xf]
        %v1262 = vld [vmem:[%s1260 + $0x4] sm:$0xf]
        %v1263 = vld [vmem:[%s1260 + $0x8] sm:$0xf]
        %v1264 = vld [vmem:[%s1260 + $0xc] sm:$0xf]
        %v1265 = vld [vmem:[%s1260 + $0x10] sm:$0xf]
        %v1266 = vld [vmem:[%s1260 + $0x14] sm:$0xf]
        %v1267 = vld [vmem:[%s1260 + $0x18] sm:$0xf]
        %v1268 = vld [vmem:[%s1260 + $0x1c] sm:$0xf]
        %v1269 = vld [vmem:[%s1260 + $0x20] sm:$0xf]
        %v1270 = vld [vmem:[%s1260 + $0x24] sm:$0xf]
        %v1271 = vld [vmem:[%s1260 + $0x28] sm:$0xf]
        %v1272 = vld [vmem:[%s1260 + $0x2c] sm:$0xf]
        %v1273 = vld [vmem:[%s1260 + $0x30] sm:$0xf]
        %v1274 = vld [vmem:[%s1260 + $0x34] sm:$0xf]
        %v1275 = vld [vmem:[%s1260 + $0x38] sm:$0xf]
        %v1276 = vld [vmem:[%s1260 + $0x3c] sm:$0xf]
        %v1277 = vld [vmem:[%s1260 + $0x40] sm:$0xf]
        %v1278 = vld [vmem:[%s1260 + $0x44] sm:$0xf]
        %v1279 = vld [vmem:[%s1260 + $0x48] sm:$0xf]
        %v1280 = vld [vmem:[%s1260 + $0x4c] sm:$0xf]
        %v1281 = vld [vmem:[%s1260 + $0x50] sm:$0xf]
        %v1282 = vld [vmem:[%s1260 + $0x54] sm:$0xf]
        %v1283 = vld [vmem:[%s1260 + $0x58] sm:$0xf]
        %v1284 = vld [vmem:[%s1260 + $0x5c] sm:$0xf]
        %v1285 = vld [vmem:[%s1260 + $0x60] sm:$0xf]
        %v1286 = vld [vmem:[%s1260 + $0x64] sm:$0xf]
        %v1287 = vld [vmem:[%s1260 + $0x68] sm:$0xf]
        %v1288 = vld [vmem:[%s1260 + $0x6c] sm:$0xf]
        %v1289 = vld [vmem:[%s1260 + $0x70] sm:$0xf]
        %v1290 = vld [vmem:[%s1260 + $0x74] sm:$0xf]
        %v1291 = vld [vmem:[%s1260 + $0x78] sm:$0xf]
        %v1292 = vld [vmem:[%s1260 + $0x7c] sm:$0xf]
        %v1293 = vld [vmem:[%s1260 + $0x80] sm:$0xf]
        %v1294 = vld [vmem:[%s1260 + $0x84] sm:$0xf]
        %v1295 = vld [vmem:[%s1260 + $0x88] sm:$0xf]
        %v1296 = vld [vmem:[%s1260 + $0x8c] sm:$0xf]
        %v1297 = vld [vmem:[%s1260 + $0x90] sm:$0xf]
        %v1298 = vld [vmem:[%s1260 + $0x94] sm:$0xf]
        %v1299 = vld [vmem:[%s1260 + $0x98] sm:$0xf]
        %v1300 = vld [vmem:[%s1260 + $0x9c] sm:$0xf]
        %v1301 = vld [vmem:[%s1260 + $0xa0] sm:$0xf]
        %v1302 = vld [vmem:[%s1260 + $0xa4] sm:$0xf]
        %v1303 = vld [vmem:[%s1260 + $0xa8] sm:$0xf]
        %v1304 = vld [vmem:[%s1260 + $0xac] sm:$0xf]
        %v1305 = vld [vmem:[%s1260 + $0xb0] sm:$0xf]
        %v1306 = vld [vmem:[%s1260 + $0xb4] sm:$0xf]
        %v1307 = vld [vmem:[%s1260 + $0xb8] sm:$0xf]
        %v1308 = vld [vmem:[%s1260 + $0xbc] sm:$0xf]
        %v1357 = vunpack.c.l.b16 %v1261
        %v1358 = vunpack.c.l.b16 %v1262
        %v1359 = vunpack.c.l.b16 %v1263
        %v1360 = vunpack.c.l.b16 %v1264
        %v1361 = vunpack.c.l.b16 %v1265
        %v1362 = vunpack.c.l.b16 %v1266
        %v1363 = vunpack.c.l.b16 %v1267
        %v1364 = vunpack.c.l.b16 %v1268
        %v1365 = vunpack.c.l.b16 %v1269
        %v1366 = vunpack.c.l.b16 %v1270
        %v1367 = vunpack.c.l.b16 %v1271
        %v1368 = vunpack.c.l.b16 %v1272
        %v1369 = vunpack.c.l.b16 %v1273
        %v1370 = vunpack.c.l.b16 %v1274
        %v1371 = vunpack.c.l.b16 %v1275
        %v1372 = vunpack.c.l.b16 %v1276
        %v1373 = vunpack.c.l.b16 %v1277
        %v1374 = vunpack.c.l.b16 %v1278
        %v1375 = vunpack.c.l.b16 %v1279
        %v1376 = vunpack.c.l.b16 %v1280
        %v1377 = vunpack.c.l.b16 %v1281
        %v1378 = vunpack.c.l.b16 %v1282
        %v1379 = vunpack.c.l.b16 %v1283
        %v1380 = vunpack.c.l.b16 %v1284
        %v1381 = vunpack.c.l.b16 %v1285
        %v1382 = vunpack.c.l.b16 %v1286
        %v1383 = vunpack.c.l.b16 %v1287
        %v1384 = vunpack.c.l.b16 %v1288
        %v1385 = vunpack.c.l.b16 %v1289
        %v1386 = vunpack.c.l.b16 %v1290
        %v1387 = vunpack.c.l.b16 %v1291
        %v1388 = vunpack.c.l.b16 %v1292
        %v1389 = vunpack.c.l.b16 %v1293
        %v1390 = vunpack.c.l.b16 %v1294
        %v1391 = vunpack.c.l.b16 %v1295
        %v1392 = vunpack.c.l.b16 %v1296
        %v1393 = vunpack.c.l.b16 %v1297
        %v1394 = vunpack.c.l.b16 %v1298
        %v1395 = vunpack.c.l.b16 %v1299
        %v1396 = vunpack.c.l.b16 %v1300
        %v1397 = vunpack.c.l.b16 %v1301
        %v1398 = vunpack.c.l.b16 %v1302
        %v1399 = vunpack.c.l.b16 %v1303
        %v1400 = vunpack.c.l.b16 %v1304
        %v1401 = vunpack.c.l.b16 %v1305
        %v1402 = vunpack.c.l.b16 %v1306
        %v1403 = vunpack.c.l.b16 %v1307
        %v1404 = vunpack.c.l.b16 %v1308
        %v1405 = vpack.c.b16 %v1358, %v1357
        %v1406 = vpack.c.b16 %v1360, %v1359
        %v1407 = vpack.c.b16 %v1362, %v1361
        %v1408 = vpack.c.b16 %v1364, %v1363
        %v1409 = vpack.c.b16 %v1366, %v1365
        %v1410 = vpack.c.b16 %v1368, %v1367
        %v1411 = vpack.c.b16 %v1370, %v1369
        %v1412 = vpack.c.b16 %v1372, %v1371
        %v1413 = vpack.c.b16 %v1374, %v1373
        %v1414 = vpack.c.b16 %v1376, %v1375
        %v1415 = vpack.c.b16 %v1378, %v1377
        %v1416 = vpack.c.b16 %v1380, %v1379
        %v1417 = vpack.c.b16 %v1382, %v1381
        %v1418 = vpack.c.b16 %v1384, %v1383
        %v1419 = vpack.c.b16 %v1386, %v1385
        %v1420 = vpack.c.b16 %v1388, %v1387
        %v1421 = vpack.c.b16 %v1390, %v1389
        %v1422 = vpack.c.b16 %v1392, %v1391
        %v1423 = vpack.c.b16 %v1394, %v1393
        %v1424 = vpack.c.b16 %v1396, %v1395
        %v1425 = vpack.c.b16 %v1398, %v1397
        %v1426 = vpack.c.b16 %v1400, %v1399
        %v1427 = vpack.c.b16 %v1402, %v1401
        %v1428 = vpack.c.b16 %v1404, %v1403
        %1453 = vmatprep.subr.bf16.mxu0 0
        %1454 = vmatpush1.bf16.msra.mxu0 %v1405
        %1455 = vmatprep.subr.bf16.mxu0 0
        %1456 = vmatpush1.bf16.msra.mxu0 %v1406
        %1457 = vmatprep.subr.bf16.mxu0 0
        %1458 = vmatpush1.bf16.msra.mxu0 %v1407
        %1459 = vmatprep.subr.bf16.mxu0 0
        %1460 = vmatpush1.bf16.msra.mxu0 %v1408
        %1461 = vmatprep.subr.bf16.mxu0 0
        %1462 = vmatpush1.bf16.msra.mxu0 %v1409
        %1463 = vmatprep.subr.bf16.mxu0 0
        %1464 = vmatpush1.bf16.msra.mxu0 %v1410
        %1465 = vmatprep.subr.bf16.mxu0 0
        %1466 = vmatpush1.bf16.msra.mxu0 %v1411
        %1467 = vmatprep.subr.bf16.mxu0 0
        %1468 = vmatpush1.bf16.msra.mxu0 %v1412
        %1469 = vmatprep.subr.bf16.mxu0 0
        %1470 = vmatpush1.bf16.msra.mxu0 %v1413
        %1471 = vmatprep.subr.bf16.mxu0 0
        %1472 = vmatpush1.bf16.msra.mxu0 %v1414
        %1473 = vmatprep.subr.bf16.mxu0 0
        %1474 = vmatpush1.bf16.msra.mxu0 %v1415
        %1475 = vmatprep.subr.bf16.mxu0 0
        %1476 = vmatpush1.bf16.msra.mxu0 %v1416
        %1477 = vmatprep.subr.bf16.mxu0 0
        %1478 = vmatpush1.bf16.msra.mxu0 %v1417
        %1479 = vmatprep.subr.bf16.mxu0 0
        %1480 = vmatpush1.bf16.msra.mxu0 %v1418
        %1481 = vmatprep.subr.bf16.mxu0 0
        %1482 = vmatpush1.bf16.msra.mxu0 %v1419
        %1483 = vmatprep.subr.bf16.mxu0 0
        %1484 = vmatpush1.bf16.msra.mxu0 %v1420
        %1485 = vmatprep.mubr.bf16.mxu0 %v808
        %1486 = vmatmul.mubr.bf16.gmra.mrb[0].mxu0 %v799
        %v1487 = vpop.f32.mrb[0].mxu0
        %v1488 = vadd.f32 0.0, %v1487
        %v1489 = vpop.f32.mrb[0].mxu0
        %v1490 = vpop.f32.mrb[0].mxu0
        %v1491 = vadd.f32 0.0, %v1490
        %v1492 = vpop.f32.mrb[0].mxu0
        %1493 = vmatprep.mubr.bf16.mxu0 %v809
        %1494 = vmatmul.mubr.bf16.gmra.mrb[0].mxu0 %v800
        %v1495 = vpop.f32.mrb[0].mxu0
        %v1496 = vadd.f32 0.0, %v1495
        %v1497 = vpop.f32.mrb[0].mxu0
        %v1498 = vpop.f32.mrb[0].mxu0
        %v1499 = vadd.f32 0.0, %v1498
        %v1500 = vpop.f32.mrb[0].mxu0
        %1501 = vmatprep.mubr.bf16.mxu0 %v810
        %1502 = vmatmul.mubr.bf16.gmra.mrb[0].mxu0 %v801
        %v1503 = vpop.f32.mrb[0].mxu0
        %v1504 = vadd.f32 0.0, %v1503
        %v1505 = vpop.f32.mrb[0].mxu0
        %v1506 = vpop.f32.mrb[0].mxu0
        %v1507 = vadd.f32 0.0, %v1506
        %v1508 = vpop.f32.mrb[0].mxu0
        %1509 = vmatprep.mubr.bf16.mxu0 %v811
        %1510 = vmatmul.mubr.bf16.gmra.mrb[0].mxu0 %v802
        %v1511 = vpop.f32.mrb[0].mxu0
        %v1512 = vadd.f32 0.0, %v1511
        %v1513 = vpop.f32.mrb[0].mxu0
        %v1514 = vpop.f32.mrb[0].mxu0
        %v1515 = vadd.f32 0.0, %v1514
        %v1516 = vpop.f32.mrb[0].mxu0
        %1517 = vmatprep.mubr.bf16.mxu0 %v812
        %1518 = vmatmul.mubr.bf16.gmra.mrb[0].mxu0 %v803
        %v1519 = vpop.f32.mrb[0].mxu0
        %v1520 = vadd.f32 0.0, %v1519
        %v1521 = vpop.f32.mrb[0].mxu0
        %v1522 = vpop.f32.mrb[0].mxu0
        %v1523 = vadd.f32 0.0, %v1522
        %v1524 = vpop.f32.mrb[0].mxu0
        %1525 = vmatprep.mubr.bf16.mxu0 %v813
        %1526 = vmatmul.mubr.bf16.gmra.mrb[0].mxu0 %v804
        %v1527 = vpop.f32.mrb[0].mxu0
        %v1528 = vadd.f32 0.0, %v1527
        %v1529 = vpop.f32.mrb[0].mxu0
        %v1530 = vpop.f32.mrb[0].mxu0
        %v1531 = vadd.f32 0.0, %v1530
        %v1532 = vpop.f32.mrb[0].mxu0
        %1533 = vmatprep.mubr.bf16.mxu0 %v814
        %1534 = vmatmul.mubr.bf16.gmra.mrb[0].mxu0 %v805
        %v1535 = vpop.f32.mrb[0].mxu0
        %v1536 = vadd.f32 0.0, %v1535
        %v1537 = vpop.f32.mrb[0].mxu0
        %v1538 = vpop.f32.mrb[0].mxu0
        %v1539 = vadd.f32 0.0, %v1538
        %v1540 = vpop.f32.mrb[0].mxu0
        %1541 = vmatprep.mubr.bf16.mxu0 %v815
        %1542 = vmatmul.mubr.bf16.gmra.mrb[0].mxu0 %v806
        %v1543 = vpop.f32.mrb[0].mxu0
        %v1544 = vadd.f32 0.0, %v1543
        %v1545 = vpop.f32.mrb[0].mxu0
        %v1546 = vpop.f32.mrb[0].mxu0
        %v1547 = vadd.f32 0.0, %v1546
        %v1548 = vpop.f32.mrb[0].mxu0
        %1549 = vdwg.mxu0
        %1550 = vmatprep.subr.bf16.mxu0 0
        %1551 = vmatpush1.bf16.msra.mxu0 %v1421
        %1552 = vmatprep.subr.bf16.mxu0 0
        %1553 = vmatpush1.bf16.msra.mxu0 %v1422
        %1554 = vmatprep.subr.bf16.mxu0 0
        %1555 = vmatpush1.bf16.msra.mxu0 %v1423
        %1556 = vmatprep.subr.bf16.mxu0 0
        %1557 = vmatpush1.bf16.msra.mxu0 %v1424
        %1558 = vmatprep.subr.bf16.mxu0 0
        %1559 = vmatpush1.bf16.msra.mxu0 %v1425
        %1560 = vmatprep.subr.bf16.mxu0 0
        %1561 = vmatpush1.bf16.msra.mxu0 %v1426
        %1562 = vmatprep.subr.bf16.mxu0 0
        %1563 = vmatpush1.bf16.msra.mxu0 %v1427
        %1564 = vmatprep.subr.bf16.mxu0 0
        %1565 = vmatpush1.bf16.msra.mxu0 %v1428
        %1566 = vmatprep.subr.bf16.mxu0 0
        %1567 = vmatpush1.bf16.msra.mxu0 0
        %1568 = vmatprep.subr.bf16.mxu0 0
        %1569 = vmatpush1.bf16.msra.mxu0 0
        %1570 = vmatprep.subr.bf16.mxu0 0
        %1571 = vmatpush1.bf16.msra.mxu0 0
        %1572 = vmatprep.subr.bf16.mxu0 0
        %1573 = vmatpush1.bf16.msra.mxu0 0
        %1574 = vmatprep.subr.bf16.mxu0 0
        %1575 = vmatpush1.bf16.msra.mxu0 0
        %1576 = vmatprep.subr.bf16.mxu0 0
        %1577 = vmatpush1.bf16.msra.mxu0 0
        %1578 = vmatprep.subr.bf16.mxu0 0
        %1579 = vmatpush1.bf16.msra.mxu0 0
        %1580 = vmatprep.subr.bf16.mxu0 0
        %1581 = vmatpush1.bf16.msra.mxu0 0
        %1582 = vmatprep.mubr.bf16.mxu0 0
        %1583 = vmatmul.mubr.bf16.gmra.mrb[0].mxu0 %v817
        %v1584 = vpop.f32.mrb[0].mxu0
        %v1585 = vadd.f32 %v1488, %v1584
        %v1586 = vpop.f32.mrb[0].mxu0
        %v1587 = vpop.f32.mrb[0].mxu0
        %v1588 = vadd.f32 %v1491, %v1587
        %v1589 = vpop.f32.mrb[0].mxu0
        %1590 = vmatprep.mubr.bf16.mxu0 0
        %1591 = vmatmul.mubr.bf16.gmra.mrb[0].mxu0 %v818
        %v1592 = vpop.f32.mrb[0].mxu0
        %v1593 = vadd.f32 %v1496, %v1592
        %v1594 = vpop.f32.mrb[0].mxu0
        %v1595 = vpop.f32.mrb[0].mxu0
        %v1596 = vadd.f32 %v1499, %v1595
        %v1597 = vpop.f32.mrb[0].mxu0
        %1598 = vmatprep.mubr.bf16.mxu0 0
        %1599 = vmatmul.mubr.bf16.gmra.mrb[0].mxu0 %v819
        %v1600 = vpop.f32.mrb[0].mxu0
        %v1601 = vadd.f32 %v1504, %v1600
        %v1602 = vpop.f32.mrb[0].mxu0
        %v1603 = vpop.f32.mrb[0].mxu0
        %v1604 = vadd.f32 %v1507, %v1603
        %v1605 = vpop.f32.mrb[0].mxu0
        %1606 = vmatprep.mubr.bf16.mxu0 0
        %1607 = vmatmul.mubr.bf16.gmra.mrb[0].mxu0 %v820
        %v1608 = vpop.f32.mrb[0].mxu0
        %v1609 = vadd.f32 %v1512, %v1608
        %v1610 = vpop.f32.mrb[0].mxu0
        %v1611 = vpop.f32.mrb[0].mxu0
        %v1612 = vadd.f32 %v1515, %v1611
        %v1613 = vpop.f32.mrb[0].mxu0
        %1614 = vmatprep.mubr.bf16.mxu0 0
        %1615 = vmatmul.mubr.bf16.gmra.mrb[0].mxu0 %v821
        %v1616 = vpop.f32.mrb[0].mxu0
        %v1617 = vadd.f32 %v1520, %v1616
        %v1618 = vpop.f32.mrb[0].mxu0
        %v1619 = vpop.f32.mrb[0].mxu0
        %v1620 = vadd.f32 %v1523, %v1619
        %v1621 = vpop.f32.mrb[0].mxu0
        %1622 = vmatprep.mubr.bf16.mxu0 0
        %1623 = vmatmul.mubr.bf16.gmra.mrb[0].mxu0 %v822
        %v1624 = vpop.f32.mrb[0].mxu0
        %v1625 = vadd.f32 %v1528, %v1624
        %v1626 = vpop.f32.mrb[0].mxu0
        %v1627 = vpop.f32.mrb[0].mxu0
        %v1628 = vadd.f32 %v1531, %v1627
        %v1629 = vpop.f32.mrb[0].mxu0
        %1630 = vmatprep.mubr.bf16.mxu0 0
        %1631 = vmatmul.mubr.bf16.gmra.mrb[0].mxu0 %v823
        %v1632 = vpop.f32.mrb[0].mxu0
        %v1633 = vadd.f32 %v1536, %v1632
        %v1634 = vpop.f32.mrb[0].mxu0
        %v1635 = vpop.f32.mrb[0].mxu0
        %v1636 = vadd.f32 %v1539, %v1635
        %v1637 = vpop.f32.mrb[0].mxu0
        %1638 = vmatprep.mubr.bf16.mxu0 0
        %1639 = vmatmul.mubr.bf16.gmra.mrb[0].mxu0 %v824
        %v1640 = vpop.f32.mrb[0].mxu0
        %v1641 = vadd.f32 %v1544, %v1640
        %v1642 = vpop.f32.mrb[0].mxu0
        %v1643 = vpop.f32.mrb[0].mxu0
        %v1644 = vadd.f32 %v1547, %v1643
        %v1645 = vpop.f32.mrb[0].mxu0
        %1646 = vdwg.mxu0
        %v1647 = vlaneseq
        %v1648 = vshrl.u32 %v1647, 7
        %v1649 = vadd.s32 %v1648, 8
        %v1650 = vadd.s32 %v1648, 16
        %v1651 = vadd.s32 %v1648, 24
        %v1652 = vadd.s32 %v1648, 32
        %v1653 = vadd.s32 %v1648, 40
        %v1654 = vadd.s32 %v1648, 48
        %v1655 = vadd.s32 %v1648, 56
        %v1656 = vadd.s32 %v1648, 64
        %v1657 = vadd.s32 %v1648, 72
        %v1658 = vadd.s32 %v1648, 80
        %v1659 = vadd.s32 %v1648, 88
        %v1660 = vadd.s32 %v1648, 96
        %v1661 = vadd.s32 %v1648, 104
        %v1662 = vadd.s32 %v1648, 112
        %v1663 = vadd.s32 %v1648, 120
        %vm1664 = vcmp.lt.s32.totalorder %v1648, 0
        %v1665 = vsub.s32 0, %v1648
        %v1666 = vsel %vm1664, %v1665, %v1648
        %v1667 = vshrl.u32 %v1666, 4
        %v1668 = vand.u32 %v1666, 15
        %v1669 = vsub.s32 0, %v1668
        %v1670 = vsel %vm1664, %v1669, %v1668
        %vm1671 = vcmp.lt.s32.totalorder %v1649, 0
        %v1672 = vsub.s32 0, %v1649
        %v1673 = vsel %vm1671, %v1672, %v1649
        %v1674 = vshrl.u32 %v1673, 4
        %v1675 = vand.u32 %v1673, 15
        %v1676 = vsub.s32 0, %v1675
        %v1677 = vsel %vm1671, %v1676, %v1675
        %vm1678 = vcmp.lt.s32.totalorder %v1650, 0
        %v1679 = vsub.s32 0, %v1650
        %v1680 = vsel %vm1678, %v1679, %v1650
        %v1681 = vshrl.u32 %v1680, 4
        %v1682 = vand.u32 %v1680, 15
        %v1683 = vsub.s32 0, %v1682
        %v1684 = vsel %vm1678, %v1683, %v1682
        %vm1685 = vcmp.lt.s32.totalorder %v1651, 0
        %v1686 = vsub.s32 0, %v1651
        %v1687 = vsel %vm1685, %v1686, %v1651
        %v1688 = vshrl.u32 %v1687, 4
        %v1689 = vand.u32 %v1687, 15
        %v1690 = vsub.s32 0, %v1689
        %v1691 = vsel %vm1685, %v1690, %v1689
        %vm1692 = vcmp.lt.s32.totalorder %v1652, 0
        %v1693 = vsub.s32 0, %v1652
        %v1694 = vsel %vm1692, %v1693, %v1652
        %v1695 = vshrl.u32 %v1694, 4
        %v1696 = vand.u32 %v1694, 15
        %v1697 = vsub.s32 0, %v1696
        %v1698 = vsel %vm1692, %v1697, %v1696
        %vm1699 = vcmp.lt.s32.totalorder %v1653, 0
        %v1700 = vsub.s32 0, %v1653
        %v1701 = vsel %vm1699, %v1700, %v1653
        %v1702 = vshrl.u32 %v1701, 4
        %v1703 = vand.u32 %v1701, 15
        %v1704 = vsub.s32 0, %v1703
        %v1705 = vsel %vm1699, %v1704, %v1703
        %vm1706 = vcmp.lt.s32.totalorder %v1654, 0
        %v1707 = vsub.s32 0, %v1654
        %v1708 = vsel %vm1706, %v1707, %v1654
        %v1709 = vshrl.u32 %v1708, 4
        %v1710 = vand.u32 %v1708, 15
        %v1711 = vsub.s32 0, %v1710
        %v1712 = vsel %vm1706, %v1711, %v1710
        %vm1713 = vcmp.lt.s32.totalorder %v1655, 0
        %v1714 = vsub.s32 0, %v1655
        %v1715 = vsel %vm1713, %v1714, %v1655
        %v1716 = vshrl.u32 %v1715, 4
        %v1717 = vand.u32 %v1715, 15
        %v1718 = vsub.s32 0, %v1717
        %v1719 = vsel %vm1713, %v1718, %v1717
        %vm1720 = vcmp.lt.s32.totalorder %v1656, 0
        %v1721 = vsub.s32 0, %v1656
        %v1722 = vsel %vm1720, %v1721, %v1656
        %v1723 = vshrl.u32 %v1722, 4
        %v1724 = vand.u32 %v1722, 15
        %v1725 = vsub.s32 0, %v1724
        %v1726 = vsel %vm1720, %v1725, %v1724
        %vm1727 = vcmp.lt.s32.totalorder %v1657, 0
        %v1728 = vsub.s32 0, %v1657
        %v1729 = vsel %vm1727, %v1728, %v1657
        %v1730 = vshrl.u32 %v1729, 4
        %v1731 = vand.u32 %v1729, 15
        %v1732 = vsub.s32 0, %v1731
        %v1733 = vsel %vm1727, %v1732, %v1731
        %vm1734 = vcmp.lt.s32.totalorder %v1658, 0
        %v1735 = vsub.s32 0, %v1658
        %v1736 = vsel %vm1734, %v1735, %v1658
        %v1737 = vshrl.u32 %v1736, 4
        %v1738 = vand.u32 %v1736, 15
        %v1739 = vsub.s32 0, %v1738
        %v1740 = vsel %vm1734, %v1739, %v1738
        %vm1741 = vcmp.lt.s32.totalorder %v1659, 0
        %v1742 = vsub.s32 0, %v1659
        %v1743 = vsel %vm1741, %v1742, %v1659
        %v1744 = vshrl.u32 %v1743, 4
        %v1745 = vand.u32 %v1743, 15
        %v1746 = vsub.s32 0, %v1745
        %v1747 = vsel %vm1741, %v1746, %v1745
        %vm1748 = vcmp.lt.s32.totalorder %v1660, 0
        %v1749 = vsub.s32 0, %v1660
        %v1750 = vsel %vm1748, %v1749, %v1660
        %v1751 = vshrl.u32 %v1750, 4
        %v1752 = vand.u32 %v1750, 15
        %v1753 = vsub.s32 0, %v1752
        %v1754 = vsel %vm1748, %v1753, %v1752
        %vm1755 = vcmp.lt.s32.totalorder %v1661, 0
        %v1756 = vsub.s32 0, %v1661
        %v1757 = vsel %vm1755, %v1756, %v1661
        %v1758 = vshrl.u32 %v1757, 4
        %v1759 = vand.u32 %v1757, 15
        %v1760 = vsub.s32 0, %v1759
        %v1761 = vsel %vm1755, %v1760, %v1759
        %vm1762 = vcmp.lt.s32.totalorder %v1662, 0
        %v1763 = vsub.s32 0, %v1662
        %v1764 = vsel %vm1762, %v1763, %v1662
        %v1765 = vshrl.u32 %v1764, 4
        %v1766 = vand.u32 %v1764, 15
        %v1767 = vsub.s32 0, %v1766
        %v1768 = vsel %vm1762, %v1767, %v1766
        %vm1769 = vcmp.lt.s32.totalorder %v1663, 0
        %v1770 = vsub.s32 0, %v1663
        %v1771 = vsel %vm1769, %v1770, %v1663
        %v1772 = vshrl.u32 %v1771, 4
        %v1773 = vand.u32 %v1771, 15
        %v1774 = vsub.s32 0, %v1773
        %v1775 = vsel %vm1769, %v1774, %v1773
        %vm1776 = vcmp.ne.s32.totalorder %v1670, 0
        %vm1777 = vcmp.ne.s32.totalorder %v1677, 0
        %vm1778 = vcmp.ne.s32.totalorder %v1684, 0
        %vm1779 = vcmp.ne.s32.totalorder %v1691, 0
        %vm1780 = vcmp.ne.s32.totalorder %v1698, 0
        %vm1781 = vcmp.ne.s32.totalorder %v1705, 0
        %vm1782 = vcmp.ne.s32.totalorder %v1712, 0
        %vm1783 = vcmp.ne.s32.totalorder %v1719, 0
        %vm1784 = vcmp.ne.s32.totalorder %v1726, 0
        %vm1785 = vcmp.ne.s32.totalorder %v1733, 0
        %vm1786 = vcmp.ne.s32.totalorder %v1740, 0
        %vm1787 = vcmp.ne.s32.totalorder %v1747, 0
        %vm1788 = vcmp.ne.s32.totalorder %v1754, 0
        %vm1789 = vcmp.ne.s32.totalorder %v1761, 0
        %vm1790 = vcmp.ne.s32.totalorder %v1768, 0
        %vm1791 = vcmp.ne.s32.totalorder %v1775, 0
        %vm1792 = vcmp.lt.s32.totalorder %v1670, 0
        %vm1793 = vcmp.lt.s32.totalorder %v1677, 0
        %vm1794 = vcmp.lt.s32.totalorder %v1684, 0
        %vm1795 = vcmp.lt.s32.totalorder %v1691, 0
        %vm1796 = vcmp.lt.s32.totalorder %v1698, 0
        %vm1797 = vcmp.lt.s32.totalorder %v1705, 0
        %vm1798 = vcmp.lt.s32.totalorder %v1712, 0
        %vm1799 = vcmp.lt.s32.totalorder %v1719, 0
        %vm1800 = vcmp.lt.s32.totalorder %v1726, 0
        %vm1801 = vcmp.lt.s32.totalorder %v1733, 0
        %vm1802 = vcmp.lt.s32.totalorder %v1740, 0
        %vm1803 = vcmp.lt.s32.totalorder %v1747, 0
        %vm1804 = vcmp.lt.s32.totalorder %v1754, 0
        %vm1805 = vcmp.lt.s32.totalorder %v1761, 0
        %vm1806 = vcmp.lt.s32.totalorder %v1768, 0
        %vm1807 = vcmp.lt.s32.totalorder %v1775, 0
        %vm1808 = vmand %vm1792, %vm1776
        %vm1809 = vmand %vm1793, %vm1777
        %vm1810 = vmand %vm1794, %vm1778
        %vm1811 = vmand %vm1795, %vm1779
        %vm1812 = vmand %vm1796, %vm1780
        %vm1813 = vmand %vm1797, %vm1781
        %vm1814 = vmand %vm1798, %vm1782
        %vm1815 = vmand %vm1799, %vm1783
        %vm1816 = vmand %vm1800, %vm1784
        %vm1817 = vmand %vm1801, %vm1785
        %vm1818 = vmand %vm1802, %vm1786
        %vm1819 = vmand %vm1803, %vm1787
        %vm1820 = vmand %vm1804, %vm1788
        %vm1821 = vmand %vm1805, %vm1789
        %vm1822 = vmand %vm1806, %vm1790
        %vm1823 = vmand %vm1807, %vm1791
        %v1824 = vadd.s32 %v1670, 16
        %v1825 = vadd.s32 %v1677, 16
        %v1826 = vadd.s32 %v1684, 16
        %v1827 = vadd.s32 %v1691, 16
        %v1828 = vadd.s32 %v1698, 16
        %v1829 = vadd.s32 %v1705, 16
        %v1830 = vadd.s32 %v1712, 16
        %v1831 = vadd.s32 %v1719, 16
        %v1832 = vadd.s32 %v1726, 16
        %v1833 = vadd.s32 %v1733, 16
        %v1834 = vadd.s32 %v1740, 16
        %v1835 = vadd.s32 %v1747, 16
        %v1836 = vadd.s32 %v1754, 16
        %v1837 = vadd.s32 %v1761, 16
        %v1838 = vadd.s32 %v1768, 16
        %v1839 = vadd.s32 %v1775, 16
        %v1840 = vsel %vm1808, %v1824, %v1670
        %v1841 = vsel %vm1809, %v1825, %v1677
        %v1842 = vsel %vm1810, %v1826, %v1684
        %v1843 = vsel %vm1811, %v1827, %v1691
        %v1844 = vsel %vm1812, %v1828, %v1698
        %v1845 = vsel %vm1813, %v1829, %v1705
        %v1846 = vsel %vm1814, %v1830, %v1712
        %v1847 = vsel %vm1815, %v1831, %v1719
        %v1848 = vsel %vm1816, %v1832, %v1726
        %v1849 = vsel %vm1817, %v1833, %v1733
        %v1850 = vsel %vm1818, %v1834, %v1740
        %v1851 = vsel %vm1819, %v1835, %v1747
        %v1852 = vsel %vm1820, %v1836, %v1754
        %v1853 = vsel %vm1821, %v1837, %v1761
        %v1854 = vsel %vm1822, %v1838, %v1768
        %v1855 = vsel %vm1823, %v1839, %v1775
        %vm1856 = vcmp.gt.s32.totalorder %v1840, 0
        %vm1857 = vcmp.gt.s32.totalorder %v1841, 0
        %vm1858 = vcmp.gt.s32.totalorder %v1842, 0
        %vm1859 = vcmp.gt.s32.totalorder %v1843, 0
        %vm1860 = vcmp.gt.s32.totalorder %v1844, 0
        %vm1861 = vcmp.gt.s32.totalorder %v1845, 0
        %vm1862 = vcmp.gt.s32.totalorder %v1846, 0
        %vm1863 = vcmp.gt.s32.totalorder %v1847, 0
        %vm1864 = vcmp.gt.s32.totalorder %v1848, 0
        %vm1865 = vcmp.gt.s32.totalorder %v1849, 0
        %vm1866 = vcmp.gt.s32.totalorder %v1850, 0
        %vm1867 = vcmp.gt.s32.totalorder %v1851, 0
        %vm1868 = vcmp.gt.s32.totalorder %v1852, 0
        %vm1869 = vcmp.gt.s32.totalorder %v1853, 0
        %vm1870 = vcmp.gt.s32.totalorder %v1854, 0
        %vm1871 = vcmp.gt.s32.totalorder %v1855, 0
        %v1872 = vrot.slane %v1149, 7
        %v1873 = vrot.slane %v1152, 7
        %v1874 = vrot.slane %v1157, 7
        %v1875 = vrot.slane %v1160, 7
        %v1876 = vrot.slane %v1165, 7
        %v1877 = vrot.slane %v1168, 7
        %v1878 = vrot.slane %v1173, 7
        %v1879 = vrot.slane %v1176, 7
        %v1880 = vrot.slane %v1181, 7
        %v1881 = vrot.slane %v1184, 7
        %v1882 = vrot.slane %v1189, 7
        %v1883 = vrot.slane %v1192, 7
        %v1884 = vrot.slane %v1197, 7
        %v1885 = vrot.slane %v1200, 7
        %v1886 = vrot.slane %v1205, 7
        %v1887 = vrot.slane %v1208, 7
        %vm1888 = vcmp.lt.s32.totalorder %v1648, 1
        %v1889 = vsel %vm1888, %v1886, %v1887
        %v1890 = vsel %vm1888, %v1885, %v1886
        %v1891 = vsel %vm1888, %v1884, %v1885
        %v1892 = vsel %vm1888, %v1883, %v1884
        %v1893 = vsel %vm1888, %v1882, %v1883
        %v1894 = vsel %vm1888, %v1881, %v1882
        %v1895 = vsel %vm1888, %v1880, %v1881
        %v1896 = vsel %vm1888, %v1879, %v1880
        %v1897 = vsel %vm1888, %v1878, %v1879
        %v1898 = vsel %vm1888, %v1877, %v1878
        %v1899 = vsel %vm1888, %v1876, %v1877
        %v1900 = vsel %vm1888, %v1875, %v1876
        %v1901 = vsel %vm1888, %v1874, %v1875
        %v1902 = vsel %vm1888, %v1873, %v1874
        %v1903 = vsel %vm1888, %v1872, %v1873
        %v1904 = vsel %vm1888, %v1887, %v1872
        %v1905 = vsel %vm1856, %v1904, 0.0
        %v1906 = vsel %vm1857, %v1903, 0.0
        %v1907 = vsel %vm1858, %v1902, 0.0
        %v1908 = vsel %vm1859, %v1901, 0.0
        %v1909 = vsel %vm1860, %v1900, 0.0
        %v1910 = vsel %vm1861, %v1899, 0.0
        %v1911 = vsel %vm1862, %v1898, 0.0
        %v1912 = vsel %vm1863, %v1897, 0.0
        %v1913 = vsel %vm1864, %v1896, 0.0
        %v1914 = vsel %vm1865, %v1895, 0.0
        %v1915 = vsel %vm1866, %v1894, 0.0
        %v1916 = vsel %vm1867, %v1893, 0.0
        %v1917 = vsel %vm1868, %v1892, 0.0
        %v1918 = vsel %vm1869, %v1891, 0.0
        %v1919 = vsel %vm1870, %v1890, 0.0
        %v1920 = vsel %vm1871, %v1889, 0.0
        %v1969 = vunpack.c.l.b16 %v1212
        %v1970 = vunpack.c.l.b16 %v1213
        %v1971 = vunpack.c.l.b16 %v1214
        %v1972 = vunpack.c.l.b16 %v1215
        %v1973 = vunpack.c.l.b16 %v1216
        %v1974 = vunpack.c.l.b16 %v1217
        %v1975 = vunpack.c.l.b16 %v1218
        %v1976 = vunpack.c.l.b16 %v1219
        %v1977 = vunpack.c.l.b16 %v1220
        %v1978 = vunpack.c.l.b16 %v1221
        %v1979 = vunpack.c.l.b16 %v1222
        %v1980 = vunpack.c.l.b16 %v1223
        %v1981 = vunpack.c.l.b16 %v1224
        %v1982 = vunpack.c.l.b16 %v1225
        %v1983 = vunpack.c.l.b16 %v1226
        %v1984 = vunpack.c.l.b16 %v1227
        %v1985 = vunpack.c.l.b16 %v1228
        %v1986 = vunpack.c.l.b16 %v1229
        %v1987 = vunpack.c.l.b16 %v1230
        %v1988 = vunpack.c.l.b16 %v1231
        %v1989 = vunpack.c.l.b16 %v1232
        %v1990 = vunpack.c.l.b16 %v1233
        %v1991 = vunpack.c.l.b16 %v1234
        %v1992 = vunpack.c.l.b16 %v1235
        %v1993 = vunpack.c.l.b16 %v1236
        %v1994 = vunpack.c.l.b16 %v1237
        %v1995 = vunpack.c.l.b16 %v1238
        %v1996 = vunpack.c.l.b16 %v1239
        %v1997 = vunpack.c.l.b16 %v1240
        %v1998 = vunpack.c.l.b16 %v1241
        %v1999 = vunpack.c.l.b16 %v1242
        %v2000 = vunpack.c.l.b16 %v1243
        %v2001 = vunpack.c.l.b16 %v1244
        %v2002 = vunpack.c.l.b16 %v1245
        %v2003 = vunpack.c.l.b16 %v1246
        %v2004 = vunpack.c.l.b16 %v1247
        %v2005 = vunpack.c.l.b16 %v1248
        %v2006 = vunpack.c.l.b16 %v1249
        %v2007 = vunpack.c.l.b16 %v1250
        %v2008 = vunpack.c.l.b16 %v1251
        %v2009 = vunpack.c.l.b16 %v1252
        %v2010 = vunpack.c.l.b16 %v1253
        %v2011 = vunpack.c.l.b16 %v1254
        %v2012 = vunpack.c.l.b16 %v1255
        %v2013 = vunpack.c.l.b16 %v1256
        %v2014 = vunpack.c.l.b16 %v1257
        %v2015 = vunpack.c.l.b16 %v1258
        %v2016 = vunpack.c.l.b16 %v1259
        %v2017 = vpack.c.b16 %v1970, %v1969
        %v2018 = vpack.c.b16 %v1972, %v1971
        %v2019 = vpack.c.b16 %v1974, %v1973
        %v2020 = vpack.c.b16 %v1976, %v1975
        %v2021 = vpack.c.b16 %v1978, %v1977
        %v2022 = vpack.c.b16 %v1980, %v1979
        %v2023 = vpack.c.b16 %v1982, %v1981
        %v2024 = vpack.c.b16 %v1984, %v1983
        %v2025 = vpack.c.b16 %v1986, %v1985
        %v2026 = vpack.c.b16 %v1988, %v1987
        %v2027 = vpack.c.b16 %v1990, %v1989
        %v2028 = vpack.c.b16 %v1992, %v1991
        %v2029 = vpack.c.b16 %v1994, %v1993
        %v2030 = vpack.c.b16 %v1996, %v1995
        %v2031 = vpack.c.b16 %v1998, %v1997
        %v2032 = vpack.c.b16 %v2000, %v1999
        %v2033 = vpack.c.b16 %v2002, %v2001
        %v2034 = vpack.c.b16 %v2004, %v2003
        %v2035 = vpack.c.b16 %v2006, %v2005
        %v2036 = vpack.c.b16 %v2008, %v2007
        %v2037 = vpack.c.b16 %v2010, %v2009
        %v2038 = vpack.c.b16 %v2012, %v2011
        %v2039 = vpack.c.b16 %v2014, %v2013
        %v2040 = vpack.c.b16 %v2016, %v2015
        %2065 = vmatprep.subr.bf16.mxu0 0
        %2066 = vmatpush1.bf16.msra.mxu0 %v2017
        %2067 = vmatprep.subr.bf16.mxu0 0
        %2068 = vmatpush1.bf16.msra.mxu0 %v2018
        %2069 = vmatprep.subr.bf16.mxu0 0
        %2070 = vmatpush1.bf16.msra.mxu0 %v2019
        %2071 = vmatprep.subr.bf16.mxu0 0
        %2072 = vmatpush1.bf16.msra.mxu0 %v2020
        %2073 = vmatprep.subr.bf16.mxu0 0
        %2074 = vmatpush1.bf16.msra.mxu0 %v2021
        %2075 = vmatprep.subr.bf16.mxu0 0
        %2076 = vmatpush1.bf16.msra.mxu0 %v2022
        %2077 = vmatprep.subr.bf16.mxu0 0
        %2078 = vmatpush1.bf16.msra.mxu0 %v2023
        %2079 = vmatprep.subr.bf16.mxu0 0
        %2080 = vmatpush1.bf16.msra.mxu0 %v2024
        %2081 = vmatprep.subr.bf16.mxu0 0
        %2082 = vmatpush1.bf16.msra.mxu0 %v2025
        %2083 = vmatprep.subr.bf16.mxu0 0
        %2084 = vmatpush1.bf16.msra.mxu0 %v2026
        %2085 = vmatprep.subr.bf16.mxu0 0
        %2086 = vmatpush1.bf16.msra.mxu0 %v2027
        %2087 = vmatprep.subr.bf16.mxu0 0
        %2088 = vmatpush1.bf16.msra.mxu0 %v2028
        %2089 = vmatprep.subr.bf16.mxu0 0
        %2090 = vmatpush1.bf16.msra.mxu0 %v2029
        %2091 = vmatprep.subr.bf16.mxu0 0
        %2092 = vmatpush1.bf16.msra.mxu0 %v2030
        %2093 = vmatprep.subr.bf16.mxu0 0
        %2094 = vmatpush1.bf16.msra.mxu0 %v2031
        %2095 = vmatprep.subr.bf16.mxu0 0
        %2096 = vmatpush1.bf16.msra.mxu0 %v2032
        %2097 = vmatprep.mubr.bf16.mxu0 %v808
        %2098 = vmatmul.mubr.bf16.gmra.mrb[0].mxu0 %v799
        %v2099 = vpop.f32.mrb[0].mxu0
        %v2100 = vadd.f32 %v1905, %v2099
        %v2101 = vpop.f32.mrb[0].mxu0
        %v2102 = vpop.f32.mrb[0].mxu0
        %v2103 = vadd.f32 %v1906, %v2102
        %v2104 = vpop.f32.mrb[0].mxu0
        %2105 = vmatprep.mubr.bf16.mxu0 %v809
        %2106 = vmatmul.mubr.bf16.gmra.mrb[0].mxu0 %v800
        %v2107 = vpop.f32.mrb[0].mxu0
        %v2108 = vadd.f32 %v1907, %v2107
        %v2109 = vpop.f32.mrb[0].mxu0
        %v2110 = vpop.f32.mrb[0].mxu0
        %v2111 = vadd.f32 %v1908, %v2110
        %v2112 = vpop.f32.mrb[0].mxu0
        %2113 = vmatprep.mubr.bf16.mxu0 %v810
        %2114 = vmatmul.mubr.bf16.gmra.mrb[0].mxu0 %v801
        %v2115 = vpop.f32.mrb[0].mxu0
        %v2116 = vadd.f32 %v1909, %v2115
        %v2117 = vpop.f32.mrb[0].mxu0
        %v2118 = vpop.f32.mrb[0].mxu0
        %v2119 = vadd.f32 %v1910, %v2118
        %v2120 = vpop.f32.mrb[0].mxu0
        %2121 = vmatprep.mubr.bf16.mxu0 %v811
        %2122 = vmatmul.mubr.bf16.gmra.mrb[0].mxu0 %v802
        %v2123 = vpop.f32.mrb[0].mxu0
        %v2124 = vadd.f32 %v1911, %v2123
        %v2125 = vpop.f32.mrb[0].mxu0
        %v2126 = vpop.f32.mrb[0].mxu0
        %v2127 = vadd.f32 %v1912, %v2126
        %v2128 = vpop.f32.mrb[0].mxu0
        %2129 = vmatprep.mubr.bf16.mxu0 %v812
        %2130 = vmatmul.mubr.bf16.gmra.mrb[0].mxu0 %v803
        %v2131 = vpop.f32.mrb[0].mxu0
        %v2132 = vadd.f32 %v1913, %v2131
        %v2133 = vpop.f32.mrb[0].mxu0
        %v2134 = vpop.f32.mrb[0].mxu0
        %v2135 = vadd.f32 %v1914, %v2134
        %v2136 = vpop.f32.mrb[0].mxu0
        %2137 = vmatprep.mubr.bf16.mxu0 %v813
        %2138 = vmatmul.mubr.bf16.gmra.mrb[0].mxu0 %v804
        %v2139 = vpop.f32.mrb[0].mxu0
        %v2140 = vadd.f32 %v1915, %v2139
        %v2141 = vpop.f32.mrb[0].mxu0
        %v2142 = vpop.f32.mrb[0].mxu0
        %v2143 = vadd.f32 %v1916, %v2142
        %v2144 = vpop.f32.mrb[0].mxu0
        %2145 = vmatprep.mubr.bf16.mxu0 %v814
        %2146 = vmatmul.mubr.bf16.gmra.mrb[0].mxu0 %v805
        %v2147 = vpop.f32.mrb[0].mxu0
        %v2148 = vadd.f32 %v1917, %v2147
        %v2149 = vpop.f32.mrb[0].mxu0
        %v2150 = vpop.f32.mrb[0].mxu0
        %v2151 = vadd.f32 %v1918, %v2150
        %v2152 = vpop.f32.mrb[0].mxu0
        %2153 = vmatprep.mubr.bf16.mxu0 %v815
        %2154 = vmatmul.mubr.bf16.gmra.mrb[0].mxu0 %v806
        %v2155 = vpop.f32.mrb[0].mxu0
        %v2156 = vadd.f32 %v1919, %v2155
        %v2157 = vpop.f32.mrb[0].mxu0
        %v2158 = vpop.f32.mrb[0].mxu0
        %v2159 = vadd.f32 %v1920, %v2158
        %v2160 = vpop.f32.mrb[0].mxu0
        %2161 = vdwg.mxu0
        %2162 = vmatprep.subr.bf16.mxu0 0
        %2163 = vmatpush1.bf16.msra.mxu0 %v2033
        %2164 = vmatprep.subr.bf16.mxu0 0
        %2165 = vmatpush1.bf16.msra.mxu0 %v2034
        %2166 = vmatprep.subr.bf16.mxu0 0
        %2167 = vmatpush1.bf16.msra.mxu0 %v2035
        %2168 = vmatprep.subr.bf16.mxu0 0
        %2169 = vmatpush1.bf16.msra.mxu0 %v2036
        %2170 = vmatprep.subr.bf16.mxu0 0
        %2171 = vmatpush1.bf16.msra.mxu0 %v2037
        %2172 = vmatprep.subr.bf16.mxu0 0
        %2173 = vmatpush1.bf16.msra.mxu0 %v2038
        %2174 = vmatprep.subr.bf16.mxu0 0
        %2175 = vmatpush1.bf16.msra.mxu0 %v2039
        %2176 = vmatprep.subr.bf16.mxu0 0
        %2177 = vmatpush1.bf16.msra.mxu0 %v2040
        %2178 = vmatprep.subr.bf16.mxu0 0
        %2179 = vmatpush1.bf16.msra.mxu0 0
        %2180 = vmatprep.subr.bf16.mxu0 0
        %2181 = vmatpush1.bf16.msra.mxu0 0
        %2182 = vmatprep.subr.bf16.mxu0 0
        %2183 = vmatpush1.bf16.msra.mxu0 0
        %2184 = vmatprep.subr.bf16.mxu0 0
        %2185 = vmatpush1.bf16.msra.mxu0 0
        %2186 = vmatprep.subr.bf16.mxu0 0
        %2187 = vmatpush1.bf16.msra.mxu0 0
        %2188 = vmatprep.subr.bf16.mxu0 0
        %2189 = vmatpush1.bf16.msra.mxu0 0
        %2190 = vmatprep.subr.bf16.mxu0 0
        %2191 = vmatpush1.bf16.msra.mxu0 0
        %2192 = vmatprep.subr.bf16.mxu0 0
        %2193 = vmatpush1.bf16.msra.mxu0 0
        %2194 = vmatprep.mubr.bf16.mxu0 0
        %2195 = vmatmul.mubr.bf16.gmra.mrb[0].mxu0 %v817
        %v2196 = vpop.f32.mrb[0].mxu0
        %v2197 = vadd.f32 %v2100, %v2196
        %v2198 = vpop.f32.mrb[0].mxu0
        %v2199 = vpop.f32.mrb[0].mxu0
        %v2200 = vadd.f32 %v2103, %v2199
        %v2201 = vpop.f32.mrb[0].mxu0
        %2202 = vmatprep.mubr.bf16.mxu0 0
        %2203 = vmatmul.mubr.bf16.gmra.mrb[0].mxu0 %v818
        %v2204 = vpop.f32.mrb[0].mxu0
        %v2205 = vadd.f32 %v2108, %v2204
        %v2206 = vpop.f32.mrb[0].mxu0
        %v2207 = vpop.f32.mrb[0].mxu0
        %v2208 = vadd.f32 %v2111, %v2207
        %v2209 = vpop.f32.mrb[0].mxu0
        %2210 = vmatprep.mubr.bf16.mxu0 0
        %2211 = vmatmul.mubr.bf16.gmra.mrb[0].mxu0 %v819
        %v2212 = vpop.f32.mrb[0].mxu0
        %v2213 = vadd.f32 %v2116, %v2212
        %v2214 = vpop.f32.mrb[0].mxu0
        %v2215 = vpop.f32.mrb[0].mxu0
        %v2216 = vadd.f32 %v2119, %v2215
        %v2217 = vpop.f32.mrb[0].mxu0
        %2218 = vmatprep.mubr.bf16.mxu0 0
        %2219 = vmatmul.mubr.bf16.gmra.mrb[0].mxu0 %v820
        %v2220 = vpop.f32.mrb[0].mxu0
        %v2221 = vadd.f32 %v2124, %v2220
        %v2222 = vpop.f32.mrb[0].mxu0
        %v2223 = vpop.f32.mrb[0].mxu0
        %v2224 = vadd.f32 %v2127, %v2223
        %v2225 = vpop.f32.mrb[0].mxu0
        %2226 = vmatprep.mubr.bf16.mxu0 0
        %2227 = vmatmul.mubr.bf16.gmra.mrb[0].mxu0 %v821
        %v2228 = vpop.f32.mrb[0].mxu0
        %v2229 = vadd.f32 %v2132, %v2228
        %v2230 = vpop.f32.mrb[0].mxu0
        %v2231 = vpop.f32.mrb[0].mxu0
        %v2232 = vadd.f32 %v2135, %v2231
        %v2233 = vpop.f32.mrb[0].mxu0
        %2234 = vmatprep.mubr.bf16.mxu0 0
        %2235 = vmatmul.mubr.bf16.gmra.mrb[0].mxu0 %v822
        %v2236 = vpop.f32.mrb[0].mxu0
        %v2237 = vadd.f32 %v2140, %v2236
        %v2238 = vpop.f32.mrb[0].mxu0
        %v2239 = vpop.f32.mrb[0].mxu0
        %v2240 = vadd.f32 %v2143, %v2239
        %v2241 = vpop.f32.mrb[0].mxu0
        %2242 = vmatprep.mubr.bf16.mxu0 0
        %2243 = vmatmul.mubr.bf16.gmra.mrb[0].mxu0 %v823
        %v2244 = vpop.f32.mrb[0].mxu0
        %v2245 = vadd.f32 %v2148, %v2244
        %v2246 = vpop.f32.mrb[0].mxu0
        %v2247 = vpop.f32.mrb[0].mxu0
        %v2248 = vadd.f32 %v2151, %v2247
        %v2249 = vpop.f32.mrb[0].mxu0
        %2250 = vmatprep.mubr.bf16.mxu0 0
        %2251 = vmatmul.mubr.bf16.gmra.mrb[0].mxu0 %v824
        %v2252 = vpop.f32.mrb[0].mxu0
        %v2253 = vadd.f32 %v2156, %v2252
        %v2254 = vpop.f32.mrb[0].mxu0
        %v2255 = vpop.f32.mrb[0].mxu0
        %v2256 = vadd.f32 %v2159, %v2255
        %v2257 = vpop.f32.mrb[0].mxu0
        %2258 = vdwg.mxu0
        %vm2259 = vcmp.lt.s32.totalorder %v1840, 15
        %vm2260 = vcmp.lt.s32.totalorder %v1841, 15
        %vm2261 = vcmp.lt.s32.totalorder %v1842, 15
        %vm2262 = vcmp.lt.s32.totalorder %v1843, 15
        %vm2263 = vcmp.lt.s32.totalorder %v1844, 15
        %vm2264 = vcmp.lt.s32.totalorder %v1845, 15
        %vm2265 = vcmp.lt.s32.totalorder %v1846, 15
        %vm2266 = vcmp.lt.s32.totalorder %v1847, 15
        %vm2267 = vcmp.lt.s32.totalorder %v1848, 15
        %vm2268 = vcmp.lt.s32.totalorder %v1849, 15
        %vm2269 = vcmp.lt.s32.totalorder %v1850, 15
        %vm2270 = vcmp.lt.s32.totalorder %v1851, 15
        %vm2271 = vcmp.lt.s32.totalorder %v1852, 15
        %vm2272 = vcmp.lt.s32.totalorder %v1853, 15
        %vm2273 = vcmp.lt.s32.totalorder %v1854, 15
        %vm2274 = vcmp.lt.s32.totalorder %v1855, 15
        %v2275 = vrot.slane %v1585, 1
        %v2276 = vrot.slane %v1588, 1
        %v2277 = vrot.slane %v1593, 1
        %v2278 = vrot.slane %v1596, 1
        %v2279 = vrot.slane %v1601, 1
        %v2280 = vrot.slane %v1604, 1
        %v2281 = vrot.slane %v1609, 1
        %v2282 = vrot.slane %v1612, 1
        %v2283 = vrot.slane %v1617, 1
        %v2284 = vrot.slane %v1620, 1
        %v2285 = vrot.slane %v1625, 1
        %v2286 = vrot.slane %v1628, 1
        %v2287 = vrot.slane %v1633, 1
        %v2288 = vrot.slane %v1636, 1
        %v2289 = vrot.slane %v1641, 1
        %v2290 = vrot.slane %v1644, 1
        %vm2291 = vcmp.lt.s32.totalorder %v1648, 7
        %v2292 = vsel %vm2291, %v2289, %v2290
        %v2293 = vsel %vm2291, %v2288, %v2289
        %v2294 = vsel %vm2291, %v2287, %v2288
        %v2295 = vsel %vm2291, %v2286, %v2287
        %v2296 = vsel %vm2291, %v2285, %v2286
        %v2297 = vsel %vm2291, %v2284, %v2285
        %v2298 = vsel %vm2291, %v2283, %v2284
        %v2299 = vsel %vm2291, %v2282, %v2283
        %v2300 = vsel %vm2291, %v2281, %v2282
        %v2301 = vsel %vm2291, %v2280, %v2281
        %v2302 = vsel %vm2291, %v2279, %v2280
        %v2303 = vsel %vm2291, %v2278, %v2279
        %v2304 = vsel %vm2291, %v2277, %v2278
        %v2305 = vsel %vm2291, %v2276, %v2277
        %v2306 = vsel %vm2291, %v2275, %v2276
        %v2307 = vsel %vm2291, %v2290, %v2275
        %v2308 = vsel %vm2259, %v2306, 0.0
        %v2309 = vsel %vm2260, %v2305, 0.0
        %v2310 = vsel %vm2261, %v2304, 0.0
        %v2311 = vsel %vm2262, %v2303, 0.0
        %v2312 = vsel %vm2263, %v2302, 0.0
        %v2313 = vsel %vm2264, %v2301, 0.0
        %v2314 = vsel %vm2265, %v2300, 0.0
        %v2315 = vsel %vm2266, %v2299, 0.0
        %v2316 = vsel %vm2267, %v2298, 0.0
        %v2317 = vsel %vm2268, %v2297, 0.0
        %v2318 = vsel %vm2269, %v2296, 0.0
        %v2319 = vsel %vm2270, %v2295, 0.0
        %v2320 = vsel %vm2271, %v2294, 0.0
        %v2321 = vsel %vm2272, %v2293, 0.0
        %v2322 = vsel %vm2273, %v2292, 0.0
        %v2323 = vsel %vm2274, %v2307, 0.0
        %v2324 = vadd.f32 %v2197, %v2308
        %v2325 = vadd.f32 %v2200, %v2309
        %v2326 = vadd.f32 %v2205, %v2310
        %v2327 = vadd.f32 %v2208, %v2311
        %v2328 = vadd.f32 %v2213, %v2312
        %v2329 = vadd.f32 %v2216, %v2313
        %v2330 = vadd.f32 %v2221, %v2314
        %v2331 = vadd.f32 %v2224, %v2315
        %v2332 = vadd.f32 %v2229, %v2316
        %v2333 = vadd.f32 %v2232, %v2317
        %v2334 = vadd.f32 %v2237, %v2318
        %v2335 = vadd.f32 %v2240, %v2319
        %v2336 = vadd.f32 %v2245, %v2320
        %v2337 = vadd.f32 %v2248, %v2321
        %v2338 = vadd.f32 %v2253, %v2322
        %v2339 = vadd.f32 %v2256, %v2323
        %v2340 = vld [vmem:[%s7] sm:$0x1]
        %v2342 = vlaneseq
        %v2343 = vshrl.u32 %v2342, 7
        %v2344 = vsub.s32 0, %v2343
        %v2345 = vrot.slane %v2340, %v2344
        %v2347 = vadd.f32 %v2324, %v2345
        %v2348 = vadd.f32 %v2325, %v2345
        %v2349 = vadd.f32 %v2326, %v2345
        %v2350 = vadd.f32 %v2327, %v2345
        %v2351 = vadd.f32 %v2328, %v2345
        %v2352 = vadd.f32 %v2329, %v2345
        %v2353 = vadd.f32 %v2330, %v2345
        %v2354 = vadd.f32 %v2331, %v2345
        %v2355 = vadd.f32 %v2332, %v2345
        %v2356 = vadd.f32 %v2333, %v2345
        %v2357 = vadd.f32 %v2334, %v2345
        %v2358 = vadd.f32 %v2335, %v2345
        %v2359 = vadd.f32 %v2336, %v2345
        %v2360 = vadd.f32 %v2337, %v2345
        %v2361 = vadd.f32 %v2338, %v2345
        %v2362 = vadd.f32 %v2339, %v2345
        %v2363 = vmax.f32 %v2347, 0.0
        %v2364 = vmax.f32 %v2348, 0.0
        %v2365 = vmax.f32 %v2349, 0.0
        %v2366 = vmax.f32 %v2350, 0.0
        %v2367 = vmax.f32 %v2351, 0.0
        %v2368 = vmax.f32 %v2352, 0.0
        %v2369 = vmax.f32 %v2353, 0.0
        %v2370 = vmax.f32 %v2354, 0.0
        %v2371 = vmax.f32 %v2355, 0.0
        %v2372 = vmax.f32 %v2356, 0.0
        %v2373 = vmax.f32 %v2357, 0.0
        %v2374 = vmax.f32 %v2358, 0.0
        %v2375 = vmax.f32 %v2359, 0.0
        %v2376 = vmax.f32 %v2360, 0.0
        %v2377 = vmax.f32 %v2361, 0.0
        %v2378 = vmax.f32 %v2362, 0.0
        %v2379 = vpack.c.bf16 %v2364, %v2363
        %v2380 = vpack.c.bf16 %v2366, %v2365
        %v2381 = vpack.c.bf16 %v2368, %v2367
        %v2382 = vpack.c.bf16 %v2370, %v2369
        %v2383 = vpack.c.bf16 %v2372, %v2371
        %v2384 = vpack.c.bf16 %v2374, %v2373
        %v2385 = vpack.c.bf16 %v2376, %v2375
        %v2386 = vpack.c.bf16 %v2378, %v2377
        %v2387 = vld [vmem:[#allocation12] sm:$0xf]
        %v2388 = vld [vmem:[#allocation12 + $0x4] sm:$0xf]
        %v2389 = vld [vmem:[#allocation12 + $0x8] sm:$0xf]
        %v2390 = vld [vmem:[#allocation12 + $0xc] sm:$0xf]
        %v2391 = vld [vmem:[#allocation12 + $0x10] sm:$0xf]
        %v2392 = vld [vmem:[#allocation12 + $0x14] sm:$0xf]
        %v2393 = vld [vmem:[#allocation12 + $0x18] sm:$0xf]
        %v2394 = vld [vmem:[#allocation12 + $0x1c] sm:$0xf]
        %v2395 = vld [vmem:[#allocation12 + $0x20] sm:$0xf]
        %v2396 = vld [vmem:[#allocation12 + $0x24] sm:$0xf]
        %v2397 = vld [vmem:[#allocation12 + $0x28] sm:$0xf]
        %v2398 = vld [vmem:[#allocation12 + $0x2c] sm:$0xf]
        %v2399 = vld [vmem:[#allocation12 + $0x30] sm:$0xf]
        %v2400 = vld [vmem:[#allocation12 + $0x34] sm:$0xf]
        %v2401 = vld [vmem:[#allocation12 + $0x38] sm:$0xf]
        %v2402 = vld [vmem:[#allocation12 + $0x3c] sm:$0xf]
        %v2403 = vld [vmem:[%s8] sm:$0x1]
        %v2405 = vlaneseq
        %v2406 = vshrl.u32 %v2405, 7
        %v2407 = vsub.s32 0, %v2406
        %v2408 = vrot.slane %v2403, %v2407
        %v2426 = vunpack.c.l.b16 %v2387
        %v2427 = vunpack.c.l.b16 %v2388
        %v2428 = vunpack.c.l.b16 %v2389
        %v2429 = vunpack.c.l.b16 %v2390
        %v2430 = vunpack.c.l.b16 %v2391
        %v2431 = vunpack.c.l.b16 %v2392
        %v2432 = vunpack.c.l.b16 %v2393
        %v2433 = vunpack.c.l.b16 %v2394
        %v2434 = vunpack.c.l.b16 %v2395
        %v2435 = vunpack.c.l.b16 %v2396
        %v2436 = vunpack.c.l.b16 %v2397
        %v2437 = vunpack.c.l.b16 %v2398
        %v2438 = vunpack.c.l.b16 %v2399
        %v2439 = vunpack.c.l.b16 %v2400
        %v2440 = vunpack.c.l.b16 %v2401
        %v2441 = vunpack.c.l.b16 %v2402
        %v2442 = vpack.c.b16 %v2427, %v2426
        %v2443 = vpack.c.b16 %v2429, %v2428
        %v2444 = vpack.c.b16 %v2431, %v2430
        %v2445 = vpack.c.b16 %v2433, %v2432
        %v2446 = vpack.c.b16 %v2435, %v2434
        %v2447 = vpack.c.b16 %v2437, %v2436
        %v2448 = vpack.c.b16 %v2439, %v2438
        %v2449 = vpack.c.b16 %v2441, %v2440
        %2458 = vmatprep.subr.bf16.mxu0 0
        %2459 = vmatpush1.bf16.msra.mxu0 %v2442
        %2460 = vmatprep.subr.bf16.mxu0 0
        %2461 = vmatpush1.bf16.msra.mxu0 %v2443
        %2462 = vmatprep.subr.bf16.mxu0 0
        %2463 = vmatpush1.bf16.msra.mxu0 %v2444
        %2464 = vmatprep.subr.bf16.mxu0 0
        %2465 = vmatpush1.bf16.msra.mxu0 %v2445
        %2466 = vmatprep.subr.bf16.mxu0 0
        %2467 = vmatpush1.bf16.msra.mxu0 %v2446
        %2468 = vmatprep.subr.bf16.mxu0 0
        %2469 = vmatpush1.bf16.msra.mxu0 %v2447
        %2470 = vmatprep.subr.bf16.mxu0 0
        %2471 = vmatpush1.bf16.msra.mxu0 %v2448
        %2472 = vmatprep.subr.bf16.mxu0 0
        %2473 = vmatpush1.bf16.msra.mxu0 %v2449
        %2474 = vmatprep.subr.bf16.mxu0 0
        %2475 = vmatpush1.bf16.msra.mxu0 0
        %2476 = vmatprep.subr.bf16.mxu0 0
        %2477 = vmatpush1.bf16.msra.mxu0 0
        %2478 = vmatprep.subr.bf16.mxu0 0
        %2479 = vmatpush1.bf16.msra.mxu0 0
        %2480 = vmatprep.subr.bf16.mxu0 0
        %2481 = vmatpush1.bf16.msra.mxu0 0
        %2482 = vmatprep.subr.bf16.mxu0 0
        %2483 = vmatpush1.bf16.msra.mxu0 0
        %2484 = vmatprep.subr.bf16.mxu0 0
        %2485 = vmatpush1.bf16.msra.mxu0 0
        %2486 = vmatprep.subr.bf16.mxu0 0
        %2487 = vmatpush1.bf16.msra.mxu0 0
        %2488 = vmatprep.subr.bf16.mxu0 0
        %2489 = vmatpush1.bf16.msra.mxu0 0
        %2490 = vmatprep.mubr.bf16.mxu0 0
        %2491 = vmatmul.mubr.bf16.gmra.mrb[0].mxu0 %v2379
        %v2492 = vpop.f32.mrb[0].mxu0
        %v2493 = vadd.f32 %v2408, %v2492
        %v2494 = vpop.f32.mrb[0].mxu0
        %v2495 = vpop.f32.mrb[0].mxu0
        %v2496 = vadd.f32 %v2408, %v2495
        %v2497 = vpop.f32.mrb[0].mxu0
        %2498 = vmatprep.mubr.bf16.mxu0 0
        %2499 = vmatmul.mubr.bf16.gmra.mrb[0].mxu0 %v2380
        %v2500 = vpop.f32.mrb[0].mxu0
        %v2501 = vadd.f32 %v2408, %v2500
        %v2502 = vpop.f32.mrb[0].mxu0
        %v2503 = vpop.f32.mrb[0].mxu0
        %v2504 = vadd.f32 %v2408, %v2503
        %v2505 = vpop.f32.mrb[0].mxu0
        %2506 = vmatprep.mubr.bf16.mxu0 0
        %2507 = vmatmul.mubr.bf16.gmra.mrb[0].mxu0 %v2381
        %v2508 = vpop.f32.mrb[0].mxu0
        %v2509 = vadd.f32 %v2408, %v2508
        %v2510 = vpop.f32.mrb[0].mxu0
        %v2511 = vpop.f32.mrb[0].mxu0
        %v2512 = vadd.f32 %v2408, %v2511
        %v2513 = vpop.f32.mrb[0].mxu0
        %2514 = vmatprep.mubr.bf16.mxu0 0
        %2515 = vmatmul.mubr.bf16.gmra.mrb[0].mxu0 %v2382
        %v2516 = vpop.f32.mrb[0].mxu0
        %v2517 = vadd.f32 %v2408, %v2516
        %v2518 = vpop.f32.mrb[0].mxu0
        %v2519 = vpop.f32.mrb[0].mxu0
        %v2520 = vadd.f32 %v2408, %v2519
        %v2521 = vpop.f32.mrb[0].mxu0
        %2522 = vmatprep.mubr.bf16.mxu0 0
        %2523 = vmatmul.mubr.bf16.gmra.mrb[0].mxu0 %v2383
        %v2524 = vpop.f32.mrb[0].mxu0
        %v2525 = vadd.f32 %v2408, %v2524
        %v2526 = vpop.f32.mrb[0].mxu0
        %v2527 = vpop.f32.mrb[0].mxu0
        %v2528 = vadd.f32 %v2408, %v2527
        %v2529 = vpop.f32.mrb[0].mxu0
        %2530 = vmatprep.mubr.bf16.mxu0 0
        %2531 = vmatmul.mubr.bf16.gmra.mrb[0].mxu0 %v2384
        %v2532 = vpop.f32.mrb[0].mxu0
        %v2533 = vadd.f32 %v2408, %v2532
        %v2534 = vpop.f32.mrb[0].mxu0
        %v2535 = vpop.f32.mrb[0].mxu0
        %v2536 = vadd.f32 %v2408, %v2535
        %v2537 = vpop.f32.mrb[0].mxu0
        %2538 = vmatprep.mubr.bf16.mxu0 0
        %2539 = vmatmul.mubr.bf16.gmra.mrb[0].mxu0 %v2385
        %v2540 = vpop.f32.mrb[0].mxu0
        %v2541 = vadd.f32 %v2408, %v2540
        %v2542 = vpop.f32.mrb[0].mxu0
        %v2543 = vpop.f32.mrb[0].mxu0
        %v2544 = vadd.f32 %v2408, %v2543
        %v2545 = vpop.f32.mrb[0].mxu0
        %2546 = vmatprep.mubr.bf16.mxu0 0
        %2547 = vmatmul.mubr.bf16.gmra.mrb[0].mxu0 %v2386
        %v2548 = vpop.f32.mrb[0].mxu0
        %v2549 = vadd.f32 %v2408, %v2548
        %v2550 = vpop.f32.mrb[0].mxu0
        %v2551 = vpop.f32.mrb[0].mxu0
        %v2552 = vadd.f32 %v2408, %v2551
        %v2553 = vpop.f32.mrb[0].mxu0
        %2554 = vdwg.mxu0
        %v2555 = vld [vmem:[%s457] sm:$0xff]
        %v2556 = vld [vmem:[%s457 + $0x8] sm:$0xff]
        %v2557 = vld [vmem:[%s457 + $0x10] sm:$0xff]
        %v2558 = vld [vmem:[%s457 + $0x18] sm:$0xff]
        %v2559 = vld [vmem:[%s457 + $0x20] sm:$0xff]
        %v2560 = vld [vmem:[%s457 + $0x28] sm:$0xff]
        %v2561 = vld [vmem:[%s457 + $0x30] sm:$0xff]
        %v2562 = vld [vmem:[%s457 + $0x38] sm:$0xff]
        %v2563 = vld [vmem:[%s457 + $0x40] sm:$0xff]
        %v2564 = vld [vmem:[%s457 + $0x48] sm:$0xff]
        %v2565 = vld [vmem:[%s457 + $0x50] sm:$0xff]
        %v2566 = vld [vmem:[%s457 + $0x58] sm:$0xff]
        %v2567 = vld [vmem:[%s457 + $0x60] sm:$0xff]
        %v2568 = vld [vmem:[%s457 + $0x68] sm:$0xff]
        %v2569 = vld [vmem:[%s457 + $0x70] sm:$0xff]
        %v2570 = vld [vmem:[%s457 + $0x78] sm:$0xff]
        %v2571 = vadd.f32 %v2493, %v2555
        %v2572 = vadd.f32 %v2496, %v2556
        %v2573 = vadd.f32 %v2501, %v2557
        %v2574 = vadd.f32 %v2504, %v2558
        %v2575 = vadd.f32 %v2509, %v2559
        %v2576 = vadd.f32 %v2512, %v2560
        %v2577 = vadd.f32 %v2517, %v2561
        %v2578 = vadd.f32 %v2520, %v2562
        %v2579 = vadd.f32 %v2525, %v2563
        %v2580 = vadd.f32 %v2528, %v2564
        %v2581 = vadd.f32 %v2533, %v2565
        %v2582 = vadd.f32 %v2536, %v2566
        %v2583 = vadd.f32 %v2541, %v2567
        %v2584 = vadd.f32 %v2544, %v2568
        %v2585 = vadd.f32 %v2549, %v2569
        %v2586 = vadd.f32 %v2552, %v2570
        %v2587 = vmax.f32 %v2571, 0.0
        %v2588 = vmax.f32 %v2572, 0.0
        %v2589 = vmax.f32 %v2573, 0.0
        %v2590 = vmax.f32 %v2574, 0.0
        %v2591 = vmax.f32 %v2575, 0.0
        %v2592 = vmax.f32 %v2576, 0.0
        %v2593 = vmax.f32 %v2577, 0.0
        %v2594 = vmax.f32 %v2578, 0.0
        %v2595 = vmax.f32 %v2579, 0.0
        %v2596 = vmax.f32 %v2580, 0.0
        %v2597 = vmax.f32 %v2581, 0.0
        %v2598 = vmax.f32 %v2582, 0.0
        %v2599 = vmax.f32 %v2583, 0.0
        %v2600 = vmax.f32 %v2584, 0.0
        %v2601 = vmax.f32 %v2585, 0.0
        %v2602 = vmax.f32 %v2586, 0.0
        %2603 = vst [vmem:[%s522] sm:$0xff] %v2587
        %2604 = vst [vmem:[%s522 + $0x8] sm:$0xff] %v2588
        %2605 = vst [vmem:[%s522 + $0x10] sm:$0xff] %v2589
        %2606 = vst [vmem:[%s522 + $0x18] sm:$0xff] %v2590
        %2607 = vst [vmem:[%s522 + $0x20] sm:$0xff] %v2591
        %2608 = vst [vmem:[%s522 + $0x28] sm:$0xff] %v2592
        %2609 = vst [vmem:[%s522 + $0x30] sm:$0xff] %v2593
        %2610 = vst [vmem:[%s522 + $0x38] sm:$0xff] %v2594
        %2611 = vst [vmem:[%s522 + $0x40] sm:$0xff] %v2595
        %2612 = vst [vmem:[%s522 + $0x48] sm:$0xff] %v2596
        %2613 = vst [vmem:[%s522 + $0x50] sm:$0xff] %v2597
        %2614 = vst [vmem:[%s522 + $0x58] sm:$0xff] %v2598
        %2615 = vst [vmem:[%s522 + $0x60] sm:$0xff] %v2599
        %2616 = vst [vmem:[%s522 + $0x68] sm:$0xff] %v2600
        %2617 = vst [vmem:[%s522 + $0x70] sm:$0xff] %v2601
        %2618 = vst [vmem:[%s522 + $0x78] sm:$0xff] %v2602
        %s2619 = sand.u32 %s279, 1
        %s2620 = scalar_lea.sflag [#allocation5], %s2619
        %s2621 = sand.u32 %s279, 1
        %s2622 = smul.addr %s2621, 128
        %s2623 = scalar_lea.vmem [#allocation14], %s2622
        // Predicated region
        $region89: #{tpu_custom_call.1} parent=55 // pred_check
          %p2624 = pneg %p289
        $region90: #{tpu_custom_call.1} parent=55 // pred_check_branch
          %2626 = sbr.rel (%p2624) target = $region92
        $region91: #{tpu_custom_call.1} parent=55 // pred_region
          %s2627 = smul.u32 8, %s36
          %s2629 = ssub.s32 2048, 2048
          %2630 = vsyncadd %s2620, %s2629
          %s2631 = smul.addr %s2627, 2
          %s2632 = smul.addr %s35, 32
          %s2633 = sadd.s32 %s2631, %s2632
          %s2634 = smul.addr %s2633, 128
          %s2635 = scalar_lea.hbm %s9, %s2634
          %s2636 = sshll.u32 %s2623, 4
          %s2637 = int_to_ptr.vmem [resolvable:$true] %s2636
          %2642 = dma.vmem_to_hbm [thread:$0]  %s2637, 2048, %s2635, %s2620, 128, 128, 8
        $region92: #{tpu_custom_call.1} parent=55 // pred_fallthru
          _
      $region56: #{tpu_custom_call.1} parent=5 // pred_fallthru
        _
      %p2643 = scmp.le.s32.totalorder 2, %s26
      // Predicated region
      $region93: #{tpu_custom_call.1} parent=5 // pred_check
        %p2644 = pneg %p2643
      $region94: #{tpu_custom_call.1} parent=5 // pred_check_branch
        %2646 = sbr.rel (%p2644) target = $region96
      $region95: #{tpu_custom_call.1} parent=5 // pred_region
        %s2647 = ssub.s32 %s26, 2
        // Predicated region
        $region97: #{tpu_custom_call.1} parent=95 // pred_check
          %p2648 = pneg %p295
        $region98: #{tpu_custom_call.1} parent=95 // pred_check_branch
          %2650 = sbr.rel (%p2648) target = $region100
        $region99: #{tpu_custom_call.1} parent=95 // pred_region
          %s2651 = sand.u32 %s280, 1
          %s2652 = scalar_lea.sflag [#allocation5], %s2651
          %s2653 = sand.u32 %s280, 1
          %s2654 = smul.addr %s2653, 128
          %s2655 = scalar_lea.vmem [#allocation14], %s2654
          %2656 = dma.done %s2652, 2048
        $region100: #{tpu_custom_call.1} parent=95 // pred_fallthru
          _
      $region96: #{tpu_custom_call.1} parent=5 // pred_fallthru
        _
    $region6: #{tpu_custom_call.1} parent=1 // loop_footer
      %s30 = sadd.s32 1, %s26
    $region7: #{tpu_custom_call.1} parent=1 // loop_footer_branch
      %25 = sbr.rel target = $region3
    $region8: #{tpu_custom_call.1} parent=1 // loop_exit
      _
    %2657 = vsyncpa [#allocation4], 1
    %s2658 = scalar_lea.sflag [#allocation4], 1
    %2659 = vsyncpa %s2658, 1
    %2660 = vsyncpa [#allocation7], 1
    %s2661 = scalar_lea.sflag [#allocation7], 1
    %2662 = vsyncpa %s2661, 1
    %2663 = vsyncpa [#allocation10], 1
    %2664 = vsyncpa [#allocation13], 1
    %2665 = vsyncpa [#allocation5], 1
    %s2666 = scalar_lea.sflag [#allocation5], 1
    %2667 = vsyncpa %s2666, 1

</llo_original>
